<compile_context>
chip_gen: v6e
topology: v6e:2x2x1
jax: 0.10.0
libtpu: 0.0.40
codegen_flags: <defaults>
</compile_context>

<pallas_src>
import functools

import jax
import jax.numpy as jnp
from jax.experimental import pallas as pl
from jax.experimental.pallas import tpu as pltpu

# ----------------------------------------------------------------------------
# Model / layout constants
# ----------------------------------------------------------------------------
N_NODES = 8            # nodes per graph
IN_FEAT = 5            # data.x feature dim
HID = 32               # hidden dim
EDGE_DIM = 4           # edge_attr dim
MAX_SHOVELS = 4        # decoder output dim
NUM_TRUCKS = 3         # static num_trucks per graph

LANES = 128            # lane width; activations / params zero-padded to this
GRAPHS_PER_BLOCK = 16  # 16 graphs * 8 nodes = 128 rows per grid step
ROWS = GRAPHS_PER_BLOCK * N_NODES   # 128

NEG = -1e30            # additive mask value (finite: survives *0.2, exp -> 0)


def _alloc_offsets():
    """Row offsets of each parameter inside the packed [P_ROWS, 128] slab."""
    off, cur = {}, 0
    for name, rows in [("wenc", 128), ("benc", 8),
                       ("w1", 128), ("ad1", 8), ("as1", 8), ("b1", 8),
                       ("w2", 128), ("ad2", 8), ("as2", 8), ("b2", 8),
                       ("wdec", 128), ("bdec", 8), ("esel", 8)]:
        off[name] = cur
        cur += rows
    return off, cur


OFF, P_ROWS = _alloc_offsets()     # P_ROWS = 584 (all offsets 8-row aligned)


# ----------------------------------------------------------------------------
# Pallas kernel: one block of GRAPHS_PER_BLOCK graphs per grid step.
#   x_ref   : [ROWS, 128]   node features, cols >= IN_FEAT zero
#   b1_ref  : [ROWS, ROWS]  layer-1 additive bias (edge term, NEG off-edge)
#   b2_ref  : [ROWS, ROWS]  layer-2 additive bias
#   p_ref   : [P_ROWS, 128] packed parameter slab (zero padded)
#   out_ref : [8, ROWS]     log-probs: sublane k = class k, lane r = node row r
# ----------------------------------------------------------------------------
def mining_gnn_kernel(x_ref, b1_ref, b2_ref, p_ref, out_ref):
    def row(name):                       # [1, 128] parameter row
        return p_ref[OFF[name]:OFF[name] + 1, :]

    def mat(name):                       # [128, 128] parameter block
        return p_ref[OFF[name]:OFF[name] + LANES, :]

    def gat_layer(h, bias_ref, wn, adn, asn, bn):
        xs = jnp.dot(h, mat(wn), preferred_element_type=jnp.float32)       # [R,128]
        a_dst = jnp.sum(xs * row(adn), axis=-1, keepdims=True)             # [R,1]
        # a_src[0,j] = sum_k asn[k]*xs[j,k]  (contraction absorbed into MXU,
        # no materialized xs.T)
        a_src = jax.lax.dot_general(row(asn), xs, (((1,), (1,)), ((), ())),
                                    preferred_element_type=jnp.float32)    # [1,R]
        s = a_dst + a_src + bias_ref[...]            # NEG off-edge / cross-graph
        s = jnp.where(s > 0.0, s, 0.2 * s)           # leaky_relu(0.2); NEG stays huge-neg
        m = jnp.max(s, axis=-1, keepdims=True)       # finite: every row has a self-loop
        pexp = jnp.exp(s - m)                        # masked entries underflow to 0
        denom = jnp.sum(pexp, axis=-1, keepdims=True)
        alpha = pexp * pl.reciprocal(denom, approx=False)   # exact: keeps 1e-4 tol
        return jnp.dot(alpha, xs, preferred_element_type=jnp.float32) + row(bn)

    # node encoder + relu
    h = jnp.dot(x_ref[...], mat("wenc"), preferred_element_type=jnp.float32)
    h = jnp.maximum(h + row("benc"), 0.0)
    # conv1 + relu
    h = jnp.maximum(gat_layer(h, b1_ref, "w1", "ad1", "as1", "b1"), 0.0)
    # conv2 (no relu)
    h = gat_layer(h, b2_ref, "w2", "ad2", "as2", "b2")
    # decoder
    logits = jnp.dot(h, mat("wdec"), preferred_element_type=jnp.float32) + row("bdec")

    # Pack: classes -> sublanes, node rows -> lanes.  lt[k, r] = logits[r, k]
    # via an [8,128] 0/1 selector on the idle MXU (exact: one nonzero/term).
    lt = jax.lax.dot_general(p_ref[OFF["esel"]:OFF["esel"] + 8, :], logits,
                             (((1,), (1,)), ((), ())),
                             preferred_element_type=jnp.float32)            # [8,R]
    cls = jax.lax.broadcasted_iota(jnp.int32, lt.shape, 0)
    lt = jnp.where(cls < MAX_SHOVELS, lt, NEG)       # log_softmax over 4 valid classes
    m = jnp.max(lt, axis=0, keepdims=True)
    z = lt - m
    lse = jnp.log(jnp.sum(jnp.exp(z), axis=0, keepdims=True))
    out_ref[...] = z - lse                           # lane-dense [8, ROWS] store


# ----------------------------------------------------------------------------
# Host-side glue: dense graphs, per-layer bias fold, block-diagonal packing.
# ----------------------------------------------------------------------------
def _dense_single(edge_index, edge_attr):
    """Dense [N,N] mask and [N,N,EDGE_DIM] edge attrs, self-loops fill='mean'."""
    src, dst = edge_index[0], edge_index[1]
    mask = jnp.zeros((N_NODES, N_NODES), jnp.float32).at[dst, src].set(1.0)
    eattr = jnp.zeros((N_NODES, N_NODES, EDGE_DIM), jnp.float32).at[dst, src].set(edge_attr)
    deg = jnp.zeros((N_NODES,), jnp.float32).at[dst].add(1.0)
    ssum = jnp.zeros((N_NODES, EDGE_DIM), jnp.float32).at[dst].add(edge_attr)
    loop_attr = ssum / jnp.maximum(deg, 1.0)[:, None]
    idx = jnp.arange(N_NODES)
    mask = mask.at[idx, idx].set(1.0)
    eattr = eattr.at[idx, idx].set(loop_attr)
    return mask, eattr


def _block_diag(vals_g):
    """[B_pad, N, N] -> block-diagonal [nb*ROWS, ROWS] (zero off-diagonal)."""
    G = GRAPHS_PER_BLOCK
    nb = vals_g.shape[0] // G
    eye = jnp.eye(G, dtype=vals_g.dtype)
    v = vals_g.reshape(nb, G, N_NODES, N_NODES)
    return jnp.einsum("ngij,gh->ngihj", v, eye).reshape(nb * ROWS, ROWS)


def _pack_params(p):
    slab = jnp.zeros((P_ROWS, LANES), jnp.float32)

    def put(s, name, m):
        r, c = m.shape
        return s.at[OFF[name]:OFF[name] + r, 0:c].set(m)

    slab = put(slab, "wenc", p["w_enc"]); slab = put(slab, "benc", p["b_enc"])
    slab = put(slab, "w1", p["w1"]); slab = put(slab, "ad1", p["ad1"])
    slab = put(slab, "as1", p["as1"]); slab = put(slab, "b1", p["b1"])
    slab = put(slab, "w2", p["w2"]); slab = put(slab, "ad2", p["ad2"])
    slab = put(slab, "as2", p["as2"]); slab = put(slab, "b2", p["b2"])
    slab = put(slab, "wdec", p["w_dec"]); slab = put(slab, "bdec", p["b_dec"])
    # [8,8] identity in the top-left lanes -> output class selector
    slab = put(slab, "esel", jnp.eye(8, dtype=jnp.float32))
    return slab


@functools.partial(jax.jit, static_argnums=(4,))
def mining_gnn_forward(x_b, edge_index, edge_attr_b, params, num_trucks):
    """x_b: [B,8,5], edge_index: [2,E] (shared topology), edge_attr_b: [B,E,4].
    Returns log-probs for the first num_trucks nodes of each graph,
    shape [B*num_trucks, MAX_SHOVELS]."""
    B = x_b.shape[0]
    G = GRAPHS_PER_BLOCK
    B_pad = ((B + G - 1) // G) * G
    if B_pad != B:  # pad with dummy graphs (discarded); self-loops keep rows valid
        pad = B_pad - B
        x_b = jnp.concatenate([x_b, jnp.zeros((pad, N_NODES, IN_FEAT), x_b.dtype)], 0)
        edge_attr_b = jnp.concatenate(
            [edge_attr_b, jnp.zeros((pad,) + edge_attr_b.shape[1:], edge_attr_b.dtype)], 0)

    mask_g, eattr_g = jax.vmap(_dense_single, in_axes=(None, 0))(edge_index, edge_attr_b)

    # Fold edge-attr channels + att_edge + mask into one additive bias per layer
    # (tiny XLA work, removes ~2.5x of the kernel's HBM traffic).
    ve1 = params["we1"] @ params["ae1"].reshape(-1)     # [EDGE_DIM]
    ve2 = params["we2"] @ params["ae2"].reshape(-1)
    et1_bd = _block_diag(jnp.einsum("gijc,c->gij", eattr_g, ve1))
    et2_bd = _block_diag(jnp.einsum("gijc,c->gij", eattr_g, ve2))
    mask_bd = _block_diag(mask_g)
    bias1 = jnp.where(mask_bd > 0, et1_bd, NEG)
    bias2 = jnp.where(mask_bd > 0, et2_bd, NEG)

    nb = B_pad // G
    x_flat = x_b.reshape(B_pad * N_NODES, IN_FEAT)
    x_pad = jnp.zeros((B_pad * N_NODES, LANES), jnp.float32).at[:, :IN_FEAT].set(x_flat)
    slab = _pack_params(params)

    out = pl.pallas_call(
        mining_gnn_kernel,
        out_shape=jax.ShapeDtypeStruct((nb * 8, ROWS), jnp.float32),
        grid=(nb,),
        in_specs=[
            pl.BlockSpec((ROWS, LANES), lambda b: (b, 0)),    # x
            pl.BlockSpec((ROWS, ROWS), lambda b: (b, 0)),     # layer-1 bias (block-diag)
            pl.BlockSpec((ROWS, ROWS), lambda b: (b, 0)),     # layer-2 bias (block-diag)
            pl.BlockSpec((P_ROWS, LANES), lambda b: (0, 0)),  # params (constant -> one DMA)
        ],
        out_specs=pl.BlockSpec((8, ROWS), lambda b: (b, 0)),  # packed lane-dense log-probs
        compiler_params=pltpu.CompilerParams(dimension_semantics=("parallel",)),
    )(x_pad, bias1, bias2, slab)

    # Unpack: [nb, 8(classes), ROWS(node rows)] -> [B_pad*N_NODES, MAX_SHOVELS]
    logp = out.reshape(nb, 8, ROWS)[:, :MAX_SHOVELS, :]
    logp = jnp.transpose(logp, (0, 2, 1)).reshape(B_pad * N_NODES, MAX_SHOVELS)
    # TODO(synk): per-graph dynamic num_trucks (the data.batch path) would need a
    # host-side gather; a single static num_trucks is used here.
    logp = logp[:B * N_NODES].reshape(B, N_NODES, MAX_SHOVELS)
    return logp[:, :num_trucks, :].reshape(B * num_trucks, MAX_SHOVELS)


# ----------------------------------------------------------------------------
# Pure-JAX reference (per-graph dense GAT, unfolded) for a correctness check.
# ----------------------------------------------------------------------------
def reference_forward(x_b, edge_index, edge_attr_b, p, num_trucks):
    mask_g, eattr_g = jax.vmap(_dense_single, in_axes=(None, 0))(edge_index, edge_attr_b)

    def one_graph(x, mask, eattr):
        def gat(h, w, a_s, a_d, w_e, a_e, b):
            xs = h @ w
            asrc = xs @ a_s.reshape(-1)
            adst = xs @ a_d.reshape(-1)
            aedge = jnp.einsum("ijc,ck,k->ij", eattr, w_e, a_e.reshape(-1))
            s = adst[:, None] + asrc[None, :] + aedge
            s = jnp.where(s > 0, s, 0.2 * s)
            s = jnp.where(mask > 0, s, -jnp.inf)
            alpha = jax.nn.softmax(s, axis=-1)
            alpha = jnp.where(mask > 0, alpha, 0.0)
            return alpha @ xs + b

        h = jax.nn.relu(x @ p["w_enc"] + p["b_enc"])
        h = jax.nn.relu(gat(h, p["w1"], p["as1"], p["ad1"], p["we1"], p["ae1"], p["b1"]))
        h = gat(h, p["w2"], p["as2"], p["ad2"], p["we2"], p["ae2"], p["b2"])
        logits = h[:num_trucks] @ p["w_dec"] + p["b_dec"]
        return jax.nn.log_softmax(logits, axis=1)

    return jax.vmap(one_graph)(x_b, mask_g, eattr_g)   # [B, num_trucks, MAX_SHOVELS]


def init_params(key):
    def nrm(k, shape, scale=0.1):
        return scale * jax.random.normal(k, shape, jnp.float32)
    ks = jax.random.split(key, 16)
    return {
        "w_enc": nrm(ks[0], (IN_FEAT, HID)), "b_enc": nrm(ks[1], (1, HID)),
        "w1": nrm(ks[2], (HID, HID)), "as1": nrm(ks[3], (1, HID)),
        "ad1": nrm(ks[4], (1, HID)), "we1": nrm(ks[5], (EDGE_DIM, HID)),
        "ae1": nrm(ks[6], (1, HID)), "b1": nrm(ks[7], (1, HID)),
        "w2": nrm(ks[8], (HID, HID)), "as2": nrm(ks[9], (1, HID)),
        "ad2": nrm(ks[10], (1, HID)), "we2": nrm(ks[11], (EDGE_DIM, HID)),
        "ae2": nrm(ks[12], (1, HID)), "b2": nrm(ks[13], (1, HID)),
        "w_dec": nrm(ks[14], (HID, MAX_SHOVELS)), "b_dec": nrm(ks[15], (1, MAX_SHOVELS)),
    }


if __name__ == "__main__":
    key = jax.random.PRNGKey(0)
    k_x, k_e, k_p = jax.random.split(key, 3)

    # 128 graphs -> grid=(8,): >=4 pipelined steps per TensorCore on v7x megacore
    B = 8 * GRAPHS_PER_BLOCK
    x_b = jax.random.normal(k_x, (B, N_NODES, IN_FEAT), jnp.float32)
    edge_index = jnp.array([
        [0, 1, 1, 2, 3, 4, 5, 6, 7, 2, 3, 0],
        [1, 0, 2, 3, 4, 5, 6, 7, 0, 5, 6, 4],
    ], dtype=jnp.int32)
    edge_attr_b = jax.random.normal(k_e, (B, edge_index.shape[1], EDGE_DIM), jnp.float32)
    params = init_params(k_p)

    out = mining_gnn_forward(x_b, edge_index, edge_attr_b, params, NUM_TRUCKS)
    out = jax.block_until_ready(out)

    ref = reference_forward(x_b, edge_index, edge_attr_b, params, NUM_TRUCKS)
    ref = ref.reshape(B * NUM_TRUCKS, MAX_SHOVELS)
    assert out.shape == (B * NUM_TRUCKS, MAX_SHOVELS)
    assert jnp.allclose(out, ref, rtol=1e-4, atol=1e-4), float(jnp.max(jnp.abs(out - ref)))
    print("KERNEL_OK")
</pallas_src>

<mosaic_0001>
module attributes {stable_mosaic.version = 11 : i64} {
  func.func @mining_gnn_kernel(%arg0: i32, %arg1: memref<128x128xf32, #tpu.memory_space<vmem>>, %arg2: memref<128x128xf32, #tpu.memory_space<vmem>>, %arg3: memref<128x128xf32, #tpu.memory_space<vmem>>, %arg4: memref<584x128xf32, #tpu.memory_space<vmem>>, %arg5: memref<8x128xf32, #tpu.memory_space<vmem>>) attributes {dimension_semantics = [#tpu.dimension_semantics<parallel>], iteration_bounds = array<i64: 8>, scalar_prefetch = 0 : i64, scratch_operands = 0 : i64, tpu.core_type = #tpu.core_type<tc>, window_params = [{transform_indices = @transform_0, window_bounds = array<i64: 128, 128>}, {transform_indices = @transform_1, window_bounds = array<i64: 128, 128>}, {transform_indices = @transform_2, window_bounds = array<i64: 128, 128>}, {pipeline_mode = #tpu.pipeline_mode<synchronous>, transform_indices = @transform_3, window_bounds = array<i64: 584, 128>}, {transform_indices = @transform_4, window_bounds = array<i64: 8, 128>}]} {
    %c0 = arith.constant 0 : index
    %c0_0 = arith.constant 0 : index
    %0 = vector.load %arg1[%c0, %c0_0] : memref<128x128xf32, #tpu.memory_space<vmem>>, vector<128x128xf32>
    %c0_1 = arith.constant 0 : index
    %c0_2 = arith.constant 0 : index
    %1 = vector.load %arg4[%c0_1, %c0_2] : memref<584x128xf32, #tpu.memory_space<vmem>>, vector<128x128xf32>
    %cst = arith.constant dense<0.000000e+00> : vector<128x128xf32>
    %2 = tpu.matmul %0, %1, %cst {dimension_numbers = #tpu.dot_dimension_numbers<[1], [0], [0], [1], [0, 0, 1, 1], [], []>} : vector<128x128xf32>, vector<128x128xf32>, vector<128x128xf32> -> vector<128x128xf32>
    %c128 = arith.constant 128 : index
    %c0_3 = arith.constant 0 : index
    %3 = vector.load %arg4[%c128, %c0_3] : memref<584x128xf32, #tpu.memory_space<vmem>>, vector<1x128xf32>
    %4 = vector.broadcast %3 : vector<1x128xf32> to vector<128x128xf32>
    %5 = arith.addf %2, %4 : vector<128x128xf32>
    %cst_4 = arith.constant 0.000000e+00 : f32
    %6 = vector.broadcast %cst_4 : f32 to vector<128x128xf32>
    %7 = arith.maximumf %5, %6 : vector<128x128xf32>
    %c136 = arith.constant 136 : index
    %c0_5 = arith.constant 0 : index
    %8 = vector.load %arg4[%c136, %c0_5] : memref<584x128xf32, #tpu.memory_space<vmem>>, vector<128x128xf32>
    %cst_6 = arith.constant dense<0.000000e+00> : vector<128x128xf32>
    %9 = tpu.matmul %7, %8, %cst_6 {dimension_numbers = #tpu.dot_dimension_numbers<[1], [0], [0], [1], [0, 0, 1, 1], [], []>} : vector<128x128xf32>, vector<128x128xf32>, vector<128x128xf32> -> vector<128x128xf32>
    %c264 = arith.constant 264 : index
    %c0_7 = arith.constant 0 : index
    %10 = vector.load %arg4[%c264, %c0_7] : memref<584x128xf32, #tpu.memory_space<vmem>>, vector<1x128xf32>
    %11 = vector.broadcast %10 : vector<1x128xf32> to vector<128x128xf32>
    %12 = arith.mulf %9, %11 : vector<128x128xf32>
    %cst_8 = arith.constant dense<0.000000e+00> : vector<128xf32>
    %13 = vector.multi_reduction <add>, %12, %cst_8 [1] : vector<128x128xf32> to vector<128xf32>
    %14 = vector.shape_cast %13 : vector<128xf32> to vector<128x1xf32>
    %c272 = arith.constant 272 : index
    %c0_9 = arith.constant 0 : index
    %15 = vector.load %arg4[%c272, %c0_9] : memref<584x128xf32, #tpu.memory_space<vmem>>, vector<1x128xf32>
    %cst_10 = arith.constant dense<0.000000e+00> : vector<1x128xf32>
    %16 = tpu.matmul %15, %9, %cst_10 {dimension_numbers = #tpu.dot_dimension_numbers<[1], [1], [0], [0], [0, 0, 1, 0], [], []>} : vector<1x128xf32>, vector<128x128xf32>, vector<1x128xf32> -> vector<1x128xf32>
    %17 = vector.broadcast %14 : vector<128x1xf32> to vector<128x128xf32>
    %18 = vector.broadcast %16 : vector<1x128xf32> to vector<128x128xf32>
    %19 = arith.addf %17, %18 : vector<128x128xf32>
    %c0_11 = arith.constant 0 : index
    %c0_12 = arith.constant 0 : index
    %20 = vector.load %arg2[%c0_11, %c0_12] : memref<128x128xf32, #tpu.memory_space<vmem>>, vector<128x128xf32>
    %21 = arith.addf %19, %20 : vector<128x128xf32>
    %cst_13 = arith.constant 0.000000e+00 : f32
    %22 = vector.broadcast %cst_13 : f32 to vector<128x128xf32>
    %23 = arith.cmpf ogt, %21, %22 : vector<128x128xf32>
    %cst_14 = arith.constant 2.000000e-01 : f32
    %24 = vector.broadcast %cst_14 : f32 to vector<128x128xf32>
    %25 = arith.mulf %24, %21 : vector<128x128xf32>
    %26 = arith.select %23, %21, %25 : vector<128x128xi1>, vector<128x128xf32>
    %cst_15 = arith.constant dense<0xFF800000> : vector<128xf32>
    %27 = vector.multi_reduction <maximumf>, %26, %cst_15 [1] : vector<128x128xf32> to vector<128xf32>
    %28 = vector.shape_cast %27 : vector<128xf32> to vector<128x1xf32>
    %29 = vector.broadcast %28 : vector<128x1xf32> to vector<128x128xf32>
    %30 = arith.subf %26, %29 : vector<128x128xf32>
    %31 = math.exp %30 : vector<128x128xf32>
    %cst_16 = arith.constant dense<0.000000e+00> : vector<128xf32>
    %32 = vector.multi_reduction <add>, %31, %cst_16 [1] : vector<128x128xf32> to vector<128xf32>
    %33 = vector.shape_cast %32 : vector<128xf32> to vector<128x1xf32>
    %34 = tpu.reciprocal %33 : vector<128x1xf32> -> vector<128x1xf32>
    %35 = vector.broadcast %34 : vector<128x1xf32> to vector<128x128xf32>
    %36 = arith.mulf %31, %35 : vector<128x128xf32>
    %cst_17 = arith.constant dense<0.000000e+00> : vector<128x128xf32>
    %37 = tpu.matmul %36, %9, %cst_17 {dimension_numbers = #tpu.dot_dimension_numbers<[1], [0], [0], [1], [0, 0, 1, 1], [], []>} : vector<128x128xf32>, vector<128x128xf32>, vector<128x128xf32> -> vector<128x128xf32>
    %c280 = arith.constant 280 : index
    %c0_18 = arith.constant 0 : index
    %38 = vector.load %arg4[%c280, %c0_18] : memref<584x128xf32, #tpu.memory_space<vmem>>, vector<1x128xf32>
    %39 = vector.broadcast %38 : vector<1x128xf32> to vector<128x128xf32>
    %40 = arith.addf %37, %39 : vector<128x128xf32>
    %cst_19 = arith.constant 0.000000e+00 : f32
    %41 = vector.broadcast %cst_19 : f32 to vector<128x128xf32>
    %42 = arith.maximumf %40, %41 : vector<128x128xf32>
    %c288 = arith.constant 288 : index
    %c0_20 = arith.constant 0 : index
    %43 = vector.load %arg4[%c288, %c0_20] : memref<584x128xf32, #tpu.memory_space<vmem>>, vector<128x128xf32>
    %cst_21 = arith.constant dense<0.000000e+00> : vector<128x128xf32>
    %44 = tpu.matmul %42, %43, %cst_21 {dimension_numbers = #tpu.dot_dimension_numbers<[1], [0], [0], [1], [0, 0, 1, 1], [], []>} : vector<128x128xf32>, vector<128x128xf32>, vector<128x128xf32> -> vector<128x128xf32>
    %c416 = arith.constant 416 : index
    %c0_22 = arith.constant 0 : index
    %45 = vector.load %arg4[%c416, %c0_22] : memref<584x128xf32, #tpu.memory_space<vmem>>, vector<1x128xf32>
    %46 = vector.broadcast %45 : vector<1x128xf32> to vector<128x128xf32>
    %47 = arith.mulf %44, %46 : vector<128x128xf32>
    %cst_23 = arith.constant dense<0.000000e+00> : vector<128xf32>
    %48 = vector.multi_reduction <add>, %47, %cst_23 [1] : vector<128x128xf32> to vector<128xf32>
    %49 = vector.shape_cast %48 : vector<128xf32> to vector<128x1xf32>
    %c424 = arith.constant 424 : index
    %c0_24 = arith.constant 0 : index
    %50 = vector.load %arg4[%c424, %c0_24] : memref<584x128xf32, #tpu.memory_space<vmem>>, vector<1x128xf32>
    %cst_25 = arith.constant dense<0.000000e+00> : vector<1x128xf32>
    %51 = tpu.matmul %50, %44, %cst_25 {dimension_numbers = #tpu.dot_dimension_numbers<[1], [1], [0], [0], [0, 0, 1, 0], [], []>} : vector<1x128xf32>, vector<128x128xf32>, vector<1x128xf32> -> vector<1x128xf32>
    %52 = vector.broadcast %49 : vector<128x1xf32> to vector<128x128xf32>
    %53 = vector.broadcast %51 : vector<1x128xf32> to vector<128x128xf32>
    %54 = arith.addf %52, %53 : vector<128x128xf32>
    %c0_26 = arith.constant 0 : index
    %c0_27 = arith.constant 0 : index
    %55 = vector.load %arg3[%c0_26, %c0_27] : memref<128x128xf32, #tpu.memory_space<vmem>>, vector<128x128xf32>
    %56 = arith.addf %54, %55 : vector<128x128xf32>
    %cst_28 = arith.constant 0.000000e+00 : f32
    %57 = vector.broadcast %cst_28 : f32 to vector<128x128xf32>
    %58 = arith.cmpf ogt, %56, %57 : vector<128x128xf32>
    %cst_29 = arith.constant 2.000000e-01 : f32
    %59 = vector.broadcast %cst_29 : f32 to vector<128x128xf32>
    %60 = arith.mulf %59, %56 : vector<128x128xf32>
    %61 = arith.select %58, %56, %60 : vector<128x128xi1>, vector<128x128xf32>
    %cst_30 = arith.constant dense<0xFF800000> : vector<128xf32>
    %62 = vector.multi_reduction <maximumf>, %61, %cst_30 [1] : vector<128x128xf32> to vector<128xf32>
    %63 = vector.shape_cast %62 : vector<128xf32> to vector<128x1xf32>
    %64 = vector.broadcast %63 : vector<128x1xf32> to vector<128x128xf32>
    %65 = arith.subf %61, %64 : vector<128x128xf32>
    %66 = math.exp %65 : vector<128x128xf32>
    %cst_31 = arith.constant dense<0.000000e+00> : vector<128xf32>
    %67 = vector.multi_reduction <add>, %66, %cst_31 [1] : vector<128x128xf32> to vector<128xf32>
    %68 = vector.shape_cast %67 : vector<128xf32> to vector<128x1xf32>
    %69 = tpu.reciprocal %68 : vector<128x1xf32> -> vector<128x1xf32>
    %70 = vector.broadcast %69 : vector<128x1xf32> to vector<128x128xf32>
    %71 = arith.mulf %66, %70 : vector<128x128xf32>
    %cst_32 = arith.constant dense<0.000000e+00> : vector<128x128xf32>
    %72 = tpu.matmul %71, %44, %cst_32 {dimension_numbers = #tpu.dot_dimension_numbers<[1], [0], [0], [1], [0, 0, 1, 1], [], []>} : vector<128x128xf32>, vector<128x128xf32>, vector<128x128xf32> -> vector<128x128xf32>
    %c432 = arith.constant 432 : index
    %c0_33 = arith.constant 0 : index
    %73 = vector.load %arg4[%c432, %c0_33] : memref<584x128xf32, #tpu.memory_space<vmem>>, vector<1x128xf32>
    %74 = vector.broadcast %73 : vector<1x128xf32> to vector<128x128xf32>
    %75 = arith.addf %72, %74 : vector<128x128xf32>
    %c440 = arith.constant 440 : index
    %c0_34 = arith.constant 0 : index
    %76 = vector.load %arg4[%c440, %c0_34] : memref<584x128xf32, #tpu.memory_space<vmem>>, vector<128x128xf32>
    %cst_35 = arith.constant dense<0.000000e+00> : vector<128x128xf32>
    %77 = tpu.matmul %75, %76, %cst_35 {dimension_numbers = #tpu.dot_dimension_numbers<[1], [0], [0], [1], [0, 0, 1, 1], [], []>} : vector<128x128xf32>, vector<128x128xf32>, vector<128x128xf32> -> vector<128x128xf32>
    %c568 = arith.constant 568 : index
    %c0_36 = arith.constant 0 : index
    %78 = vector.load %arg4[%c568, %c0_36] : memref<584x128xf32, #tpu.memory_space<vmem>>, vector<1x128xf32>
    %79 = vector.broadcast %78 : vector<1x128xf32> to vector<128x128xf32>
    %80 = arith.addf %77, %79 : vector<128x128xf32>
    %c576 = arith.constant 576 : index
    %c0_37 = arith.constant 0 : index
    %81 = vector.load %arg4[%c576, %c0_37] : memref<584x128xf32, #tpu.memory_space<vmem>>, vector<8x128xf32>
    %cst_38 = arith.constant dense<0.000000e+00> : vector<8x128xf32>
    %82 = tpu.matmul %81, %80, %cst_38 {dimension_numbers = #tpu.dot_dimension_numbers<[1], [1], [0], [0], [0, 0, 1, 0], [], []>} : vector<8x128xf32>, vector<128x128xf32>, vector<8x128xf32> -> vector<8x128xf32>
    %83 = tpu.iota {dimensions = array<i32: 0>} : vector<8x128xi32>
    %c4_i32 = arith.constant 4 : i32
    %84 = vector.broadcast %c4_i32 : i32 to vector<8x128xi32>
    %85 = arith.cmpi slt, %83, %84 : vector<8x128xi32>
    %cst_39 = arith.constant -1.000000e+30 : f32
    %86 = vector.broadcast %cst_39 : f32 to vector<8x128xf32>
    %87 = arith.select %85, %82, %86 : vector<8x128xi1>, vector<8x128xf32>
    %cst_40 = arith.constant dense<0xFF800000> : vector<128xf32>
    %88 = vector.multi_reduction <maximumf>, %87, %cst_40 [0] : vector<8x128xf32> to vector<128xf32>
    %89 = vector.shape_cast %88 : vector<128xf32> to vector<1x128xf32>
    %90 = vector.broadcast %89 : vector<1x128xf32> to vector<8x128xf32>
    %91 = arith.subf %87, %90 : vector<8x128xf32>
    %92 = math.exp %91 : vector<8x128xf32>
    %cst_41 = arith.constant dense<0.000000e+00> : vector<128xf32>
    %93 = vector.multi_reduction <add>, %92, %cst_41 [0] : vector<8x128xf32> to vector<128xf32>
    %94 = vector.shape_cast %93 : vector<128xf32> to vector<1x128xf32>
    %95 = math.log %94 : vector<1x128xf32>
    %96 = vector.broadcast %95 : vector<1x128xf32> to vector<8x128xf32>
    %97 = arith.subf %91, %96 : vector<8x128xf32>
    %c0_42 = arith.constant 0 : index
    %c0_43 = arith.constant 0 : index
    %98 = vector.load %arg5[%c0_42, %c0_43] : memref<8x128xf32, #tpu.memory_space<vmem>>, vector<8x128xf32>
    tpu.vector_store %arg5[%c0_42, %c0_43], %97 {strides = array<i32>} : memref<8x128xf32, #tpu.memory_space<vmem>>, vector<8x128xf32>,
    return
  }
  func.func @transform_0(%arg0: i32) -> (i32, i32) {
    %c0_i32 = arith.constant 0 : i32
    %c0_i32_0 = arith.constant 0 : i32
    return %arg0, %c0_i32 : i32, i32
  }
  func.func @transform_1(%arg0: i32) -> (i32, i32) {
    %c0_i32 = arith.constant 0 : i32
    %c0_i32_0 = arith.constant 0 : i32
    return %arg0, %c0_i32 : i32, i32
  }
  func.func @transform_2(%arg0: i32) -> (i32, i32) {
    %c0_i32 = arith.constant 0 : i32
    %c0_i32_0 = arith.constant 0 : i32
    return %arg0, %c0_i32 : i32, i32
  }
  func.func @transform_3(%arg0: i32) -> (i32, i32) {
    %c0_i32 = arith.constant 0 : i32
    %c0_i32_0 = arith.constant 0 : i32
    %c0_i32_1 = arith.constant 0 : i32
    return %c0_i32, %c0_i32_0 : i32, i32
  }
  func.func @transform_4(%arg0: i32) -> (i32, i32) {
    %c0_i32 = arith.constant 0 : i32
    %c0_i32_0 = arith.constant 0 : i32
    return %arg0, %c0_i32 : i32, i32
  }
}

</mosaic_0001>

<llo_original>
// kernel: mining_gnn_forward.1
$region0: #{mining_gnn_forward.1}
  #allocation0 [shape = 'u32[]', space=smem, size = 0x4, offset = 0x4, fixed_abs, tag = 'smem constant byte address 0x4 - core index']
  #allocation1 [shape = 'u32[144,128]{1,0:T(1,128)}', space=vmem, size = 0x12000, scoped, tag = 'internal scratch']
  %s0 = inlined_call_operand.vmem [shape: f32[1024,128], index: 0, kind: input, shape index: {}]
  %s1 = inlined_call_operand.vmem [shape: f32[1024,128], index: 1, kind: input, shape index: {}]
  %s2 = inlined_call_operand.vmem [shape: f32[1024,128], index: 2, kind: input, shape index: {}]
  %s3 = inlined_call_operand.vmem [shape: f32[584,128], index: 3, kind: input, shape index: {}]
  %s4 = inlined_call_operand.vmem [shape: f32[64,128], index: 4, kind: output, shape index: {}]
  %s5 = sld [smem:[#allocation0]]
  $region49: #{mining_gnn_forward.1} parent=0
    _
  %s7 = ssub.s32 1, %s5
  %s8 = scalar_select 0, %s7, %s5
  loop: start=0, step=1, limit=10
  $region2: #{mining_gnn_forward.1} parent=0 // loop_pre_header
    _
  $region3: #{mining_gnn_forward.1} parent=0 // loop_header
    %s10 = sphi 0, %s14
    %p11 = scmp.ge.s32.totalorder %s10, 10
    %s20 = sphi 0, %s22
    %s23 = sphi 0, %s20
    %s24 = sphi 0, %s23
    %s40 = sphi 0, %s24
    %s46 = sphi 0, %s48
    %s49 = sphi 0, %s46
    %s50 = sphi 0, %s49
    %s66 = sphi 0, %s50
    %s72 = sphi 0, %s74
    %s75 = sphi 0, %s72
    %s76 = sphi 0, %s75
    %s92 = sphi 0, %s76
    %s96 = sphi 0, %s96
    %s98 = sphi 0, %s96
    %s99 = sphi 0, %s98
    %s113 = sphi 0, %s99
    %s119 = sphi 0, %s121
    %s122 = sphi 0, %s119
    %s123 = sphi 0, %s122
    %s139 = sphi 0, %s123
  $region4: #{mining_gnn_forward.1} parent=0 // loop_header_branch
    %13 = sbr.rel (%p11) target = $region8
  $region5: #{mining_gnn_forward.1} parent=0 // loop_body
    %s15 = ssub.s32 %s10, 1
    %s16 = ssub.s32 %s10, 2
    %s17 = sadd.s32 %s10, 1
    %s18 = ssub.s32 %s10, %s17
    %p19 = scmp.eq.s32.totalorder %s18, 0
    %s21 = sadd.s32 %s20, 1
    %s22 = scalar_select %p19, %s20, %s21
    %p25 = pneg %p19
    %p26 = scmp.eq.s32.totalorder %s10, 7
    %p27 = por %p25, %p26
    %p28 = scmp.ne.s32.totalorder %s20, %s23
    %p29 = scmp.eq.s32.totalorder %s10, 0
    %p30 = por %p28, %p29
    %p31 = scmp.ne.s32.totalorder %s20, %s23
    %p32 = scmp.eq.s32.totalorder %s15, 7
    %p33 = por %p31, %p32
    %p34 = scmp.ne.s32.totalorder %s23, %s24
    %p35 = scmp.eq.s32.totalorder %s15, 0
    %p36 = por %p34, %p35
    %p37 = scmp.ne.s32.totalorder %s23, %s24
    %p38 = scmp.eq.s32.totalorder %s16, 7
    %p39 = por %p37, %p38
    %p41 = scmp.ne.s32.totalorder %s24, %s40
    %p42 = scmp.eq.s32.totalorder %s16, 0
    %p43 = por %p41, %p42
    %s44 = ssub.s32 %s10, %s17
    %p45 = scmp.eq.s32.totalorder %s44, 0
    %s47 = sadd.s32 %s46, 1
    %s48 = scalar_select %p45, %s46, %s47
    %p51 = pneg %p45
    %p52 = scmp.eq.s32.totalorder %s10, 7
    %p53 = por %p51, %p52
    %p54 = scmp.ne.s32.totalorder %s46, %s49
    %p55 = scmp.eq.s32.totalorder %s10, 0
    %p56 = por %p54, %p55
    %p57 = scmp.ne.s32.totalorder %s46, %s49
    %p58 = scmp.eq.s32.totalorder %s15, 7
    %p59 = por %p57, %p58
    %p60 = scmp.ne.s32.totalorder %s49, %s50
    %p61 = scmp.eq.s32.totalorder %s15, 0
    %p62 = por %p60, %p61
    %p63 = scmp.ne.s32.totalorder %s49, %s50
    %p64 = scmp.eq.s32.totalorder %s16, 7
    %p65 = por %p63, %p64
    %p67 = scmp.ne.s32.totalorder %s50, %s66
    %p68 = scmp.eq.s32.totalorder %s16, 0
    %p69 = por %p67, %p68
    %s70 = ssub.s32 %s10, %s17
    %p71 = scmp.eq.s32.totalorder %s70, 0
    %s73 = sadd.s32 %s72, 1
    %s74 = scalar_select %p71, %s72, %s73
    %p77 = pneg %p71
    %p78 = scmp.eq.s32.totalorder %s10, 7
    %p79 = por %p77, %p78
    %p80 = scmp.ne.s32.totalorder %s72, %s75
    %p81 = scmp.eq.s32.totalorder %s10, 0
    %p82 = por %p80, %p81
    %p83 = scmp.ne.s32.totalorder %s72, %s75
    %p84 = scmp.eq.s32.totalorder %s15, 7
    %p85 = por %p83, %p84
    %p86 = scmp.ne.s32.totalorder %s75, %s76
    %p87 = scmp.eq.s32.totalorder %s15, 0
    %p88 = por %p86, %p87
    %p89 = scmp.ne.s32.totalorder %s75, %s76
    %p90 = scmp.eq.s32.totalorder %s16, 7
    %p91 = por %p89, %p90
    %p93 = scmp.ne.s32.totalorder %s76, %s92
    %p94 = scmp.eq.s32.totalorder %s16, 0
    %p95 = por %p93, %p94
    %s97 = sadd.s32 %s96, 1
    %p100 = scmp.eq.s32.totalorder %s10, 7
    %p101 = scmp.ne.s32.totalorder %s96, %s98
    %p102 = scmp.eq.s32.totalorder %s10, 0
    %p103 = por %p101, %p102
    %p104 = scmp.ne.s32.totalorder %s96, %s98
    %p105 = scmp.eq.s32.totalorder %s15, 7
    %p106 = por %p104, %p105
    %p107 = scmp.ne.s32.totalorder %s98, %s99
    %p108 = scmp.eq.s32.totalorder %s15, 0
    %p109 = por %p107, %p108
    %p110 = scmp.ne.s32.totalorder %s98, %s99
    %p111 = scmp.eq.s32.totalorder %s16, 7
    %p112 = por %p110, %p111
    %p114 = scmp.ne.s32.totalorder %s99, %s113
    %p115 = scmp.eq.s32.totalorder %s16, 0
    %p116 = por %p114, %p115
    %s117 = ssub.s32 %s10, %s17
    %p118 = scmp.eq.s32.totalorder %s117, 0
    %s120 = sadd.s32 %s119, 1
    %s121 = scalar_select %p118, %s119, %s120
    %p124 = pneg %p118
    %p125 = scmp.eq.s32.totalorder %s10, 7
    %p126 = por %p124, %p125
    %p127 = scmp.ne.s32.totalorder %s119, %s122
    %p128 = scmp.eq.s32.totalorder %s10, 0
    %p129 = por %p127, %p128
    %p130 = scmp.ne.s32.totalorder %s119, %s122
    %p131 = scmp.eq.s32.totalorder %s15, 7
    %p132 = por %p130, %p131
    %p133 = scmp.ne.s32.totalorder %s122, %s123
    %p134 = scmp.eq.s32.totalorder %s15, 0
    %p135 = por %p133, %p134
    %p136 = scmp.ne.s32.totalorder %s122, %s123
    %p137 = scmp.eq.s32.totalorder %s16, 7
    %p138 = por %p136, %p137
    %p140 = scmp.ne.s32.totalorder %s123, %s139
    %p141 = scmp.eq.s32.totalorder %s16, 0
    %p142 = por %p140, %p141
    %p143 = scmp.le.s32.totalorder 1, %s10
    %p144 = scmp.lt.s32.totalorder %s10, 9
    %p145 = pnand %p143, %p144
    %p146 = pneg %p145
    // Predicated region
    $region9: #{mining_gnn_forward.1} parent=5 // pred_check
      _
    $region10: #{mining_gnn_forward.1} parent=5 // pred_check_branch
      %148 = sbr.rel (%p145) target = $region12
    $region11: #{mining_gnn_forward.1} parent=5 // pred_region
      %s149 = ssub.s32 %s10, 1
      // Predicated region
      $region13: #{mining_gnn_forward.1} parent=11 // pred_check
        %p150 = pneg %p109
      $region14: #{mining_gnn_forward.1} parent=11 // pred_check_branch
        %152 = sbr.rel (%p150) target = $region16
      $region15: #{mining_gnn_forward.1} parent=11 // pred_region
        _
      $region16: #{mining_gnn_forward.1} parent=11 // pred_fallthru
        _
    $region12: #{mining_gnn_forward.1} parent=5 // pred_fallthru
      _
    %p153 = scmp.lt.s32.totalorder %s10, 8
    // Predicated region
    $region17: #{mining_gnn_forward.1} parent=5 // pred_check
      %p154 = pneg %p153
    $region18: #{mining_gnn_forward.1} parent=5 // pred_check_branch
      %156 = sbr.rel (%p154) target = $region20
    $region19: #{mining_gnn_forward.1} parent=5 // pred_region
      // Predicated region
      $region21: #{mining_gnn_forward.1} parent=19 // pred_check
        %p157 = pneg %p30
      $region22: #{mining_gnn_forward.1} parent=19 // pred_check_branch
        %159 = sbr.rel (%p157) target = $region24
      $region23: #{mining_gnn_forward.1} parent=19 // pred_region
        %s160 = smul.u32 16, %s10
        %p161 = scmp.lt.s32.totalorder %s160, 127
        %s162 = scalar_select %p161, %s160, 127
        %s163 = smul.addr %s162, 8
        %s164 = scalar_lea.vmem %s0, %s163
        %s165 = smul.u32 16, %s10
      $region24: #{mining_gnn_forward.1} parent=19 // pred_fallthru
        _
      // Predicated region
      $region25: #{mining_gnn_forward.1} parent=19 // pred_check
        %p166 = pneg %p56
      $region26: #{mining_gnn_forward.1} parent=19 // pred_check_branch
        %168 = sbr.rel (%p166) target = $region28
      $region27: #{mining_gnn_forward.1} parent=19 // pred_region
        %s169 = smul.u32 16, %s10
        %p170 = scmp.lt.s32.totalorder %s169, 127
        %s171 = scalar_select %p170, %s169, 127
        %s172 = smul.addr %s171, 8
        %s173 = scalar_lea.vmem %s1, %s172
        %s174 = smul.u32 16, %s10
      $region28: #{mining_gnn_forward.1} parent=19 // pred_fallthru
        _
      // Predicated region
      $region29: #{mining_gnn_forward.1} parent=19 // pred_check
        %p175 = pneg %p82
      $region30: #{mining_gnn_forward.1} parent=19 // pred_check_branch
        %177 = sbr.rel (%p175) target = $region32
      $region31: #{mining_gnn_forward.1} parent=19 // pred_region
        %s178 = smul.u32 16, %s10
        %p179 = scmp.lt.s32.totalorder %s178, 127
        %s180 = scalar_select %p179, %s178, 127
        %s181 = smul.addr %s180, 8
        %s182 = scalar_lea.vmem %s2, %s181
        %s183 = smul.u32 16, %s10
      $region32: #{mining_gnn_forward.1} parent=19 // pred_fallthru
        _
    $region20: #{mining_gnn_forward.1} parent=5 // pred_fallthru
      _
    %p184 = scmp.le.s32.totalorder 1, %s10
    %p185 = scmp.lt.s32.totalorder %s10, 9
    %p186 = pnand %p184, %p185
    %p187 = pneg %p186
    // Predicated region
    $region33: #{mining_gnn_forward.1} parent=5 // pred_check
      _
    $region34: #{mining_gnn_forward.1} parent=5 // pred_check_branch
      %189 = sbr.rel (%p186) target = $region36
    $region35: #{mining_gnn_forward.1} parent=5 // pred_region
      %s190 = ssub.s32 %s10, 1
      %s191 = smul.u32 16, %s15
      %p192 = scmp.lt.s32.totalorder %s191, 127
      %s193 = scalar_select %p192, %s191, 127
      %s194 = smul.addr %s193, 8
      %s195 = scalar_lea.vmem %s0, %s194
      %p196 = pneg %p36
      %p197 = pneg %p33
      %s198 = smul.u32 16, %s15
      %p199 = scmp.lt.s32.totalorder %s198, 127
      %s200 = scalar_select %p199, %s198, 127
      %s201 = smul.addr %s200, 8
      %s202 = scalar_lea.vmem %s1, %s201
      %p203 = pneg %p62
      %p204 = pneg %p59
      %s205 = smul.u32 16, %s15
      %p206 = scmp.lt.s32.totalorder %s205, 127
      %s207 = scalar_select %p206, %s205, 127
      %s208 = smul.addr %s207, 8
      %s209 = scalar_lea.vmem %s2, %s208
      %p210 = pneg %p88
      %p211 = pneg %p85
      %p212 = pneg %p109
      %p213 = pneg %p106
      %p214 = pneg %p135
      %p215 = pneg %p132
      %p216 = scmp.lt.s32.totalorder %s15, 7
      %s217 = scalar_select %p216, %s15, 7
      %s218 = smul.addr %s217, 8
      %s219 = scalar_lea.vmem %s4, %s218
      %s220 = smul.u32 16, %s15
      %p221 = scmp.lt.s32.totalorder %s220, 127
      %s222 = scalar_select %p221, %s220, 127
      %s223 = smul.addr %s222, 8
      %s224 = scalar_lea.vmem %s0, %s223
      %s225 = smul.u32 16, %s15
      %s226 = smul.u32 16, %s15
      %p227 = scmp.lt.s32.totalorder %s226, 127
      %s228 = scalar_select %p227, %s226, 127
      %s229 = smul.addr %s228, 8
      %s230 = scalar_lea.vmem %s1, %s229
      %s231 = smul.u32 16, %s15
      %s232 = smul.u32 16, %s15
      %p233 = scmp.lt.s32.totalorder %s232, 127
      %s234 = scalar_select %p233, %s232, 127
      %s235 = smul.addr %s234, 8
      %s236 = scalar_lea.vmem %s2, %s235
      %s237 = smul.u32 16, %s15
      %p238 = scmp.lt.s32.totalorder %s15, 7
      %s239 = scalar_select %p238, %s15, 7
      %s240 = smul.addr %s239, 8
      %s241 = scalar_lea.vmem %s4, %s240
      %v242 = vld [vmem:[%s224] sm:$0xff]
      %v243 = vld [vmem:[%s224 + $0x8] sm:$0xff]
      %v244 = vld [vmem:[%s224 + $0x10] sm:$0xff]
      %v245 = vld [vmem:[%s224 + $0x18] sm:$0xff]
      %v246 = vld [vmem:[%s224 + $0x20] sm:$0xff]
      %v247 = vld [vmem:[%s224 + $0x28] sm:$0xff]
      %v248 = vld [vmem:[%s224 + $0x30] sm:$0xff]
      %v249 = vld [vmem:[%s224 + $0x38] sm:$0xff]
      %v250 = vld [vmem:[%s224 + $0x40] sm:$0xff]
      %v251 = vld [vmem:[%s224 + $0x48] sm:$0xff]
      %v252 = vld [vmem:[%s224 + $0x50] sm:$0xff]
      %v253 = vld [vmem:[%s224 + $0x58] sm:$0xff]
      %v254 = vld [vmem:[%s224 + $0x60] sm:$0xff]
      %v255 = vld [vmem:[%s224 + $0x68] sm:$0xff]
      %v256 = vld [vmem:[%s224 + $0x70] sm:$0xff]
      %v257 = vld [vmem:[%s224 + $0x78] sm:$0xff]
      %v258 = vld [vmem:[%s3] sm:$0xff]
      %v259 = vld [vmem:[%s3 + $0x8] sm:$0xff]
      %v260 = vld [vmem:[%s3 + $0x10] sm:$0xff]
      %v261 = vld [vmem:[%s3 + $0x18] sm:$0xff]
      %v262 = vld [vmem:[%s3 + $0x20] sm:$0xff]
      %v263 = vld [vmem:[%s3 + $0x28] sm:$0xff]
      %v264 = vld [vmem:[%s3 + $0x30] sm:$0xff]
      %v265 = vld [vmem:[%s3 + $0x38] sm:$0xff]
      %v266 = vld [vmem:[%s3 + $0x40] sm:$0xff]
      %v267 = vld [vmem:[%s3 + $0x48] sm:$0xff]
      %v268 = vld [vmem:[%s3 + $0x50] sm:$0xff]
      %v269 = vld [vmem:[%s3 + $0x58] sm:$0xff]
      %v270 = vld [vmem:[%s3 + $0x60] sm:$0xff]
      %v271 = vld [vmem:[%s3 + $0x68] sm:$0xff]
      %v272 = vld [vmem:[%s3 + $0x70] sm:$0xff]
      %v273 = vld [vmem:[%s3 + $0x78] sm:$0xff]
      %v274 = vld [vmem:[%s3 + $0x80] sm:$0x1]
      %v275 = vlaneseq
      %v276 = vshrl.u32 %v275, 7
      %v277 = vsub.s32 0, %v276
      %v278 = vrot.slane %v274, %v277
      %279 = vmatprep.subr.mxu0 0.0
      %280 = vmatpush1.msra.mxu0 %v273
      %281 = vmatprep.subr.mxu0 0.0
      %282 = vmatpush1.msra.mxu0 %v272
      %283 = vmatprep.subr.mxu0 0.0
      %284 = vmatpush1.msra.mxu0 %v271
      %285 = vmatprep.subr.mxu0 0.0
      %286 = vmatpush1.msra.mxu0 %v270
      %287 = vmatprep.subr.mxu0 0.0
      %288 = vmatpush1.msra.mxu0 %v269
      %289 = vmatprep.subr.mxu0 0.0
      %290 = vmatpush1.msra.mxu0 %v268
      %291 = vmatprep.subr.mxu0 0.0
      %292 = vmatpush1.msra.mxu0 %v267
      %293 = vmatprep.subr.mxu0 0.0
      %294 = vmatpush1.msra.mxu0 %v266
      %295 = vmatprep.subr.mxu0 0.0
      %296 = vmatpush1.msra.mxu0 %v265
      %297 = vmatprep.subr.mxu0 0.0
      %298 = vmatpush1.msra.mxu0 %v264
      %299 = vmatprep.subr.mxu0 0.0
      %300 = vmatpush1.msra.mxu0 %v263
      %301 = vmatprep.subr.mxu0 0.0
      %302 = vmatpush1.msra.mxu0 %v262
      %303 = vmatprep.subr.mxu0 0.0
      %304 = vmatpush1.msra.mxu0 %v261
      %305 = vmatprep.subr.mxu0 0.0
      %306 = vmatpush1.msra.mxu0 %v260
      %307 = vmatprep.subr.mxu0 0.0
      %308 = vmatpush1.msra.mxu0 %v259
      %309 = vmatprep.subr.mxu0 0.0
      %310 = vmatpush1.msra.mxu0 %v258
      %311 = vmatprep.subr.mxu0 0.0
      %312 = vmatpush2.msra.mxu0 0.0
      %313 = vmatprep.subr.mxu0 0.0
      %314 = vmatpush2.msra.mxu0 0.0
      %315 = vmatprep.subr.mxu0 0.0
      %316 = vmatpush2.msra.mxu0 0.0
      %317 = vmatprep.subr.mxu0 0.0
      %318 = vmatpush2.msra.mxu0 0.0
      %319 = vmatprep.subr.mxu0 0.0
      %320 = vmatpush2.msra.mxu0 0.0
      %321 = vmatprep.subr.mxu0 0.0
      %322 = vmatpush2.msra.mxu0 0.0
      %323 = vmatprep.subr.mxu0 0.0
      %324 = vmatpush2.msra.mxu0 0.0
      %325 = vmatprep.subr.mxu0 0.0
      %326 = vmatpush2.msra.mxu0 0.0
      %327 = vmatprep.subr.mxu0 0.0
      %328 = vmatpush2.msra.mxu0 0.0
      %329 = vmatprep.subr.mxu0 0.0
      %330 = vmatpush2.msra.mxu0 0.0
      %331 = vmatprep.subr.mxu0 0.0
      %332 = vmatpush2.msra.mxu0 0.0
      %333 = vmatprep.subr.mxu0 0.0
      %334 = vmatpush2.msra.mxu0 0.0
      %335 = vmatprep.subr.mxu0 0.0
      %336 = vmatpush2.msra.mxu0 0.0
      %337 = vmatprep.subr.mxu0 0.0
      %338 = vmatpush2.msra.mxu0 0.0
      %339 = vmatprep.subr.mxu0 0.0
      %340 = vmatpush2.msra.mxu0 0.0
      %341 = vmatprep.subr.mxu0 0.0
      %342 = vmatpush2.msra.mxu0 0.0
      %343 = vmatprep.mubr.f32.mxu0 0.0
      %344 = vmatmul.mubr.f32.gmra.mxu0 %v242
      %v345 = vpop.f32.mrf.mxu0
      %v346 = vadd.f32 %v278, %v345
      %v347 = vpop.f32.mrf.mxu0
      %348 = vmatprep.mubr.f32.mxu0 0.0
      %349 = vmatmul.mubr.f32.gmra.mxu0 %v243
      %v350 = vpop.f32.mrf.mxu0
      %v351 = vadd.f32 %v278, %v350
      %v352 = vpop.f32.mrf.mxu0
      %353 = vmatprep.mubr.f32.mxu0 0.0
      %354 = vmatmul.mubr.f32.gmra.mxu0 %v244
      %v355 = vpop.f32.mrf.mxu0
      %v356 = vadd.f32 %v278, %v355
      %v357 = vpop.f32.mrf.mxu0
      %358 = vmatprep.mubr.f32.mxu0 0.0
      %359 = vmatmul.mubr.f32.gmra.mxu0 %v245
      %v360 = vpop.f32.mrf.mxu0
      %v361 = vadd.f32 %v278, %v360
      %v362 = vpop.f32.mrf.mxu0
      %363 = vmatprep.mubr.f32.mxu0 0.0
      %364 = vmatmul.mubr.f32.gmra.mxu0 %v246
      %v365 = vpop.f32.mrf.mxu0
      %v366 = vadd.f32 %v278, %v365
      %v367 = vpop.f32.mrf.mxu0
      %368 = vmatprep.mubr.f32.mxu0 0.0
      %369 = vmatmul.mubr.f32.gmra.mxu0 %v247
      %v370 = vpop.f32.mrf.mxu0
      %v371 = vadd.f32 %v278, %v370
      %v372 = vpop.f32.mrf.mxu0
      %373 = vmatprep.mubr.f32.mxu0 0.0
      %374 = vmatmul.mubr.f32.gmra.mxu0 %v248
      %v375 = vpop.f32.mrf.mxu0
      %v376 = vadd.f32 %v278, %v375
      %v377 = vpop.f32.mrf.mxu0
      %378 = vmatprep.mubr.f32.mxu0 0.0
      %379 = vmatmul.mubr.f32.gmra.mxu0 %v249
      %v380 = vpop.f32.mrf.mxu0
      %v381 = vadd.f32 %v278, %v380
      %v382 = vpop.f32.mrf.mxu0
      %383 = vmatprep.mubr.f32.mxu0 0.0
      %384 = vmatmul.mubr.f32.gmra.mxu0 %v250
      %v385 = vpop.f32.mrf.mxu0
      %v386 = vadd.f32 %v278, %v385
      %v387 = vpop.f32.mrf.mxu0
      %388 = vmatprep.mubr.f32.mxu0 0.0
      %389 = vmatmul.mubr.f32.gmra.mxu0 %v251
      %v390 = vpop.f32.mrf.mxu0
      %v391 = vadd.f32 %v278, %v390
      %v392 = vpop.f32.mrf.mxu0
      %393 = vmatprep.mubr.f32.mxu0 0.0
      %394 = vmatmul.mubr.f32.gmra.mxu0 %v252
      %v395 = vpop.f32.mrf.mxu0
      %v396 = vadd.f32 %v278, %v395
      %v397 = vpop.f32.mrf.mxu0
      %398 = vmatprep.mubr.f32.mxu0 0.0
      %399 = vmatmul.mubr.f32.gmra.mxu0 %v253
      %v400 = vpop.f32.mrf.mxu0
      %v401 = vadd.f32 %v278, %v400
      %v402 = vpop.f32.mrf.mxu0
      %403 = vmatprep.mubr.f32.mxu0 0.0
      %404 = vmatmul.mubr.f32.gmra.mxu0 %v254
      %v405 = vpop.f32.mrf.mxu0
      %v406 = vadd.f32 %v278, %v405
      %v407 = vpop.f32.mrf.mxu0
      %408 = vmatprep.mubr.f32.mxu0 0.0
      %409 = vmatmul.mubr.f32.gmra.mxu0 %v255
      %v410 = vpop.f32.mrf.mxu0
      %v411 = vadd.f32 %v278, %v410
      %v412 = vpop.f32.mrf.mxu0
      %413 = vmatprep.mubr.f32.mxu0 0.0
      %414 = vmatmul.mubr.f32.gmra.mxu0 %v256
      %v415 = vpop.f32.mrf.mxu0
      %v416 = vadd.f32 %v278, %v415
      %v417 = vpop.f32.mrf.mxu0
      %418 = vmatprep.mubr.f32.mxu0 0.0
      %419 = vmatmul.mubr.f32.gmra.mxu0 %v257
      %v420 = vpop.f32.mrf.mxu0
      %v421 = vadd.f32 %v278, %v420
      %v422 = vpop.f32.mrf.mxu0
      %423 = vdwg.mxu0
      %v424 = vmax.f32 %v346, 0.0
      %v425 = vmax.f32 %v351, 0.0
      %v426 = vmax.f32 %v356, 0.0
      %v427 = vmax.f32 %v361, 0.0
      %v428 = vmax.f32 %v366, 0.0
      %v429 = vmax.f32 %v371, 0.0
      %v430 = vmax.f32 %v376, 0.0
      %v431 = vmax.f32 %v381, 0.0
      %v432 = vmax.f32 %v386, 0.0
      %v433 = vmax.f32 %v391, 0.0
      %v434 = vmax.f32 %v396, 0.0
      %v435 = vmax.f32 %v401, 0.0
      %v436 = vmax.f32 %v406, 0.0
      %v437 = vmax.f32 %v411, 0.0
      %v438 = vmax.f32 %v416, 0.0
      %v439 = vmax.f32 %v421, 0.0
      %v440 = vld [vmem:[%s3 + $0x88] sm:$0xff]
      %v441 = vld [vmem:[%s3 + $0x90] sm:$0xff]
      %v442 = vld [vmem:[%s3 + $0x98] sm:$0xff]
      %v443 = vld [vmem:[%s3 + $0xa0] sm:$0xff]
      %v444 = vld [vmem:[%s3 + $0xa8] sm:$0xff]
      %v445 = vld [vmem:[%s3 + $0xb0] sm:$0xff]
      %v446 = vld [vmem:[%s3 + $0xb8] sm:$0xff]
      %v447 = vld [vmem:[%s3 + $0xc0] sm:$0xff]
      %v448 = vld [vmem:[%s3 + $0xc8] sm:$0xff]
      %v449 = vld [vmem:[%s3 + $0xd0] sm:$0xff]
      %v450 = vld [vmem:[%s3 + $0xd8] sm:$0xff]
      %v451 = vld [vmem:[%s3 + $0xe0] sm:$0xff]
      %v452 = vld [vmem:[%s3 + $0xe8] sm:$0xff]
      %v453 = vld [vmem:[%s3 + $0xf0] sm:$0xff]
      %v454 = vld [vmem:[%s3 + $0xf8] sm:$0xff]
      %v455 = vld [vmem:[%s3 + $0x100] sm:$0xff]
      %456 = vmatprep.subr.mxu0 0.0
      %457 = vmatpush1.msra.mxu0 %v455
      %458 = vmatprep.subr.mxu0 0.0
      %459 = vmatpush1.msra.mxu0 %v454
      %460 = vmatprep.subr.mxu0 0.0
      %461 = vmatpush1.msra.mxu0 %v453
      %462 = vmatprep.subr.mxu0 0.0
      %463 = vmatpush1.msra.mxu0 %v452
      %464 = vmatprep.subr.mxu0 0.0
      %465 = vmatpush1.msra.mxu0 %v451
      %466 = vmatprep.subr.mxu0 0.0
      %467 = vmatpush1.msra.mxu0 %v450
      %468 = vmatprep.subr.mxu0 0.0
      %469 = vmatpush1.msra.mxu0 %v449
      %470 = vmatprep.subr.mxu0 0.0
      %471 = vmatpush1.msra.mxu0 %v448
      %472 = vmatprep.subr.mxu0 0.0
      %473 = vmatpush1.msra.mxu0 %v447
      %474 = vmatprep.subr.mxu0 0.0
      %475 = vmatpush1.msra.mxu0 %v446
      %476 = vmatprep.subr.mxu0 0.0
      %477 = vmatpush1.msra.mxu0 %v445
      %478 = vmatprep.subr.mxu0 0.0
      %479 = vmatpush1.msra.mxu0 %v444
      %480 = vmatprep.subr.mxu0 0.0
      %481 = vmatpush1.msra.mxu0 %v443
      %482 = vmatprep.subr.mxu0 0.0
      %483 = vmatpush1.msra.mxu0 %v442
      %484 = vmatprep.subr.mxu0 0.0
      %485 = vmatpush1.msra.mxu0 %v441
      %486 = vmatprep.subr.mxu0 0.0
      %487 = vmatpush1.msra.mxu0 %v440
      %488 = vmatprep.subr.mxu0 0.0
      %489 = vmatpush2.msra.mxu0 0.0
      %490 = vmatprep.subr.mxu0 0.0
      %491 = vmatpush2.msra.mxu0 0.0
      %492 = vmatprep.subr.mxu0 0.0
      %493 = vmatpush2.msra.mxu0 0.0
      %494 = vmatprep.subr.mxu0 0.0
      %495 = vmatpush2.msra.mxu0 0.0
      %496 = vmatprep.subr.mxu0 0.0
      %497 = vmatpush2.msra.mxu0 0.0
      %498 = vmatprep.subr.mxu0 0.0
      %499 = vmatpush2.msra.mxu0 0.0
      %500 = vmatprep.subr.mxu0 0.0
      %501 = vmatpush2.msra.mxu0 0.0
      %502 = vmatprep.subr.mxu0 0.0
      %503 = vmatpush2.msra.mxu0 0.0
      %504 = vmatprep.subr.mxu0 0.0
      %505 = vmatpush2.msra.mxu0 0.0
      %506 = vmatprep.subr.mxu0 0.0
      %507 = vmatpush2.msra.mxu0 0.0
      %508 = vmatprep.subr.mxu0 0.0
      %509 = vmatpush2.msra.mxu0 0.0
      %510 = vmatprep.subr.mxu0 0.0
      %511 = vmatpush2.msra.mxu0 0.0
      %512 = vmatprep.subr.mxu0 0.0
      %513 = vmatpush2.msra.mxu0 0.0
      %514 = vmatprep.subr.mxu0 0.0
      %515 = vmatpush2.msra.mxu0 0.0
      %516 = vmatprep.subr.mxu0 0.0
      %517 = vmatpush2.msra.mxu0 0.0
      %518 = vmatprep.subr.mxu0 0.0
      %519 = vmatpush2.msra.mxu0 0.0
      %520 = vmatprep.mubr.f32.mxu0 0.0
      %521 = vmatmul.mubr.f32.gmra.mxu0 %v424
      %v522 = vpop.f32.mrf.mxu0
      %v523 = vadd.f32 0.0, %v522
      %v524 = vpop.f32.mrf.mxu0
      %525 = vmatprep.mubr.f32.mxu0 0.0
      %526 = vmatmul.mubr.f32.gmra.mxu0 %v425
      %v527 = vpop.f32.mrf.mxu0
      %v528 = vadd.f32 0.0, %v527
      %v529 = vpop.f32.mrf.mxu0
      %530 = vmatprep.mubr.f32.mxu0 0.0
      %531 = vmatmul.mubr.f32.gmra.mxu0 %v426
      %v532 = vpop.f32.mrf.mxu0
      %v533 = vadd.f32 0.0, %v532
      %v534 = vpop.f32.mrf.mxu0
      %535 = vmatprep.mubr.f32.mxu0 0.0
      %536 = vmatmul.mubr.f32.gmra.mxu0 %v427
      %v537 = vpop.f32.mrf.mxu0
      %v538 = vadd.f32 0.0, %v537
      %v539 = vpop.f32.mrf.mxu0
      %540 = vmatprep.mubr.f32.mxu0 0.0
      %541 = vmatmul.mubr.f32.gmra.mxu0 %v428
      %v542 = vpop.f32.mrf.mxu0
      %v543 = vadd.f32 0.0, %v542
      %v544 = vpop.f32.mrf.mxu0
      %545 = vmatprep.mubr.f32.mxu0 0.0
      %546 = vmatmul.mubr.f32.gmra.mxu0 %v429
      %v547 = vpop.f32.mrf.mxu0
      %v548 = vadd.f32 0.0, %v547
      %v549 = vpop.f32.mrf.mxu0
      %550 = vmatprep.mubr.f32.mxu0 0.0
      %551 = vmatmul.mubr.f32.gmra.mxu0 %v430
      %v552 = vpop.f32.mrf.mxu0
      %v553 = vadd.f32 0.0, %v552
      %v554 = vpop.f32.mrf.mxu0
      %555 = vmatprep.mubr.f32.mxu0 0.0
      %556 = vmatmul.mubr.f32.gmra.mxu0 %v431
      %v557 = vpop.f32.mrf.mxu0
      %v558 = vadd.f32 0.0, %v557
      %v559 = vpop.f32.mrf.mxu0
      %560 = vmatprep.mubr.f32.mxu0 0.0
      %561 = vmatmul.mubr.f32.gmra.mxu0 %v432
      %v562 = vpop.f32.mrf.mxu0
      %v563 = vadd.f32 0.0, %v562
      %v564 = vpop.f32.mrf.mxu0
      %565 = vmatprep.mubr.f32.mxu0 0.0
      %566 = vmatmul.mubr.f32.gmra.mxu0 %v433
      %v567 = vpop.f32.mrf.mxu0
      %v568 = vadd.f32 0.0, %v567
      %v569 = vpop.f32.mrf.mxu0
      %570 = vmatprep.mubr.f32.mxu0 0.0
      %571 = vmatmul.mubr.f32.gmra.mxu0 %v434
      %v572 = vpop.f32.mrf.mxu0
      %v573 = vadd.f32 0.0, %v572
      %v574 = vpop.f32.mrf.mxu0
      %575 = vmatprep.mubr.f32.mxu0 0.0
      %576 = vmatmul.mubr.f32.gmra.mxu0 %v435
      %v577 = vpop.f32.mrf.mxu0
      %v578 = vadd.f32 0.0, %v577
      %v579 = vpop.f32.mrf.mxu0
      %580 = vmatprep.mubr.f32.mxu0 0.0
      %581 = vmatmul.mubr.f32.gmra.mxu0 %v436
      %v582 = vpop.f32.mrf.mxu0
      %v583 = vadd.f32 0.0, %v582
      %v584 = vpop.f32.mrf.mxu0
      %585 = vmatprep.mubr.f32.mxu0 0.0
      %586 = vmatmul.mubr.f32.gmra.mxu0 %v437
      %v587 = vpop.f32.mrf.mxu0
      %v588 = vadd.f32 0.0, %v587
      %v589 = vpop.f32.mrf.mxu0
      %590 = vmatprep.mubr.f32.mxu0 0.0
      %591 = vmatmul.mubr.f32.gmra.mxu0 %v438
      %v592 = vpop.f32.mrf.mxu0
      %v593 = vadd.f32 0.0, %v592
      %v594 = vpop.f32.mrf.mxu0
      %595 = vmatprep.mubr.f32.mxu0 0.0
      %596 = vmatmul.mubr.f32.gmra.mxu0 %v439
      %v597 = vpop.f32.mrf.mxu0
      %v598 = vadd.f32 0.0, %v597
      %v599 = vpop.f32.mrf.mxu0
      %600 = vdwg.mxu0
      %v601 = vld [vmem:[%s3 + $0x108] sm:$0x1]
      %v602 = vlaneseq
      %v603 = vshrl.u32 %v602, 7
      %v604 = vsub.s32 0, %v603
      %v605 = vrot.slane %v601, %v604
      %v606 = vmul.f32 %v523, %v605
      %v607 = vmul.f32 %v528, %v605
      %v608 = vmul.f32 %v533, %v605
      %v609 = vmul.f32 %v538, %v605
      %v610 = vmul.f32 %v543, %v605
      %v611 = vmul.f32 %v548, %v605
      %v612 = vmul.f32 %v553, %v605
      %v613 = vmul.f32 %v558, %v605
      %v614 = vmul.f32 %v563, %v605
      %v615 = vmul.f32 %v568, %v605
      %v616 = vmul.f32 %v573, %v605
      %v617 = vmul.f32 %v578, %v605
      %v618 = vmul.f32 %v583, %v605
      %v619 = vmul.f32 %v588, %v605
      %v620 = vmul.f32 %v593, %v605
      %v621 = vmul.f32 %v598, %v605
      %622 = vadd.xlane.f32.xlu0 %v606
      %v623 = vpop.xlane.xlu0 %622
      %624 = vadd.xlane.f32.xlu0 %v607
      %v625 = vpop.xlane.xlu0 %624
      %626 = vadd.xlane.f32.xlu0 %v608
      %v627 = vpop.xlane.xlu0 %626
      %628 = vadd.xlane.f32.xlu0 %v609
      %v629 = vpop.xlane.xlu0 %628
      %630 = vadd.xlane.f32.xlu0 %v610
      %v631 = vpop.xlane.xlu0 %630
      %632 = vadd.xlane.f32.xlu0 %v611
      %v633 = vpop.xlane.xlu0 %632
      %634 = vadd.xlane.f32.xlu0 %v612
      %v635 = vpop.xlane.xlu0 %634
      %636 = vadd.xlane.f32.xlu0 %v613
      %v637 = vpop.xlane.xlu0 %636
      %638 = vadd.xlane.f32.xlu0 %v614
      %v639 = vpop.xlane.xlu0 %638
      %640 = vadd.xlane.f32.xlu0 %v615
      %v641 = vpop.xlane.xlu0 %640
      %642 = vadd.xlane.f32.xlu0 %v616
      %v643 = vpop.xlane.xlu0 %642
      %644 = vadd.xlane.f32.xlu0 %v617
      %v645 = vpop.xlane.xlu0 %644
      %646 = vadd.xlane.f32.xlu0 %v618
      %v647 = vpop.xlane.xlu0 %646
      %648 = vadd.xlane.f32.xlu0 %v619
      %v649 = vpop.xlane.xlu0 %648
      %650 = vadd.xlane.f32.xlu0 %v620
      %v651 = vpop.xlane.xlu0 %650
      %652 = vadd.xlane.f32.xlu0 %v621
      %v653 = vpop.xlane.xlu0 %652
      %v654 = vld [vmem:[%s3 + $0x110] sm:$0x1]
      %655 = vmatprep.subr.mxu0 0.0
      %656 = vmatpush1.xpose.msra.mxu0 %v598
      %657 = vmatprep.subr.mxu0 0.0
      %658 = vmatpush1.xpose.msra.mxu0 %v593
      %659 = vmatprep.subr.mxu0 0.0
      %660 = vmatpush1.xpose.msra.mxu0 %v588
      %661 = vmatprep.subr.mxu0 0.0
      %662 = vmatpush1.xpose.msra.mxu0 %v583
      %663 = vmatprep.subr.mxu0 0.0
      %664 = vmatpush1.xpose.msra.mxu0 %v578
      %665 = vmatprep.subr.mxu0 0.0
      %666 = vmatpush1.xpose.msra.mxu0 %v573
      %667 = vmatprep.subr.mxu0 0.0
      %668 = vmatpush1.xpose.msra.mxu0 %v568
      %669 = vmatprep.subr.mxu0 0.0
      %670 = vmatpush1.xpose.msra.mxu0 %v563
      %671 = vmatprep.subr.mxu0 0.0
      %672 = vmatpush1.xpose.msra.mxu0 %v558
      %673 = vmatprep.subr.mxu0 0.0
      %674 = vmatpush1.xpose.msra.mxu0 %v553
      %675 = vmatprep.subr.mxu0 0.0
      %676 = vmatpush1.xpose.msra.mxu0 %v548
      %677 = vmatprep.subr.mxu0 0.0
      %678 = vmatpush1.xpose.msra.mxu0 %v543
      %679 = vmatprep.subr.mxu0 0.0
      %680 = vmatpush1.xpose.msra.mxu0 %v538
      %681 = vmatprep.subr.mxu0 0.0
      %682 = vmatpush1.xpose.msra.mxu0 %v533
      %683 = vmatprep.subr.mxu0 0.0
      %684 = vmatpush1.xpose.msra.mxu0 %v528
      %685 = vmatprep.subr.mxu0 0.0
      %686 = vmatpush1.xpose.msra.mxu0 %v523
      %687 = vmatprep.subr.mxu0 0.0
      %688 = vmatpush2.xpose.msra.mxu0 0.0
      %689 = vmatprep.subr.mxu0 0.0
      %690 = vmatpush2.xpose.msra.mxu0 0.0
      %691 = vmatprep.subr.mxu0 0.0
      %692 = vmatpush2.xpose.msra.mxu0 0.0
      %693 = vmatprep.subr.mxu0 0.0
      %694 = vmatpush2.xpose.msra.mxu0 0.0
      %695 = vmatprep.subr.mxu0 0.0
      %696 = vmatpush2.xpose.msra.mxu0 0.0
      %697 = vmatprep.subr.mxu0 0.0
      %698 = vmatpush2.xpose.msra.mxu0 0.0
      %699 = vmatprep.subr.mxu0 0.0
      %700 = vmatpush2.xpose.msra.mxu0 0.0
      %701 = vmatprep.subr.mxu0 0.0
      %702 = vmatpush2.xpose.msra.mxu0 0.0
      %703 = vmatprep.subr.mxu0 0.0
      %704 = vmatpush2.xpose.msra.mxu0 0.0
      %705 = vmatprep.subr.mxu0 0.0
      %706 = vmatpush2.xpose.msra.mxu0 0.0
      %707 = vmatprep.subr.mxu0 0.0
      %708 = vmatpush2.xpose.msra.mxu0 0.0
      %709 = vmatprep.subr.mxu0 0.0
      %710 = vmatpush2.xpose.msra.mxu0 0.0
      %711 = vmatprep.subr.mxu0 0.0
      %712 = vmatpush2.xpose.msra.mxu0 0.0
      %713 = vmatprep.subr.mxu0 0.0
      %714 = vmatpush2.xpose.msra.mxu0 0.0
      %715 = vmatprep.subr.mxu0 0.0
      %716 = vmatpush2.xpose.msra.mxu0 0.0
      %717 = vmatprep.subr.mxu0 0.0
      %718 = vmatpush2.xpose.msra.mxu0 0.0
      %719 = vmatprep.mubr.f32.mxu0 0.0
      %720 = vmatmul.mubr.f32.gmra.mxu0 %v654
      %v721 = vpop.f32.mrf.mxu0
      %v722 = vadd.f32 0.0, %v721
      %v723 = vpop.f32.mrf.mxu0
      %724 = vdwg.mxu0
      %v725 = vlaneseq
      %v726 = vshrl.u32 %v725, 7
      %v727 = vsub.s32 0, %v726
      %v728 = vrot.slane %v722, %v727
      %v729 = vadd.f32 %v623, %v728
      %v730 = vadd.f32 %v625, %v728
      %v731 = vadd.f32 %v627, %v728
      %v732 = vadd.f32 %v629, %v728
      %v733 = vadd.f32 %v631, %v728
      %v734 = vadd.f32 %v633, %v728
      %v735 = vadd.f32 %v635, %v728
      %v736 = vadd.f32 %v637, %v728
      %v737 = vadd.f32 %v639, %v728
      %v738 = vadd.f32 %v641, %v728
      %v739 = vadd.f32 %v643, %v728
      %v740 = vadd.f32 %v645, %v728
      %v741 = vadd.f32 %v647, %v728
      %v742 = vadd.f32 %v649, %v728
      %v743 = vadd.f32 %v651, %v728
      %v744 = vadd.f32 %v653, %v728
      %v745 = vld [vmem:[%s230] sm:$0xff]
      %v746 = vld [vmem:[%s230 + $0x8] sm:$0xff]
      %v747 = vld [vmem:[%s230 + $0x10] sm:$0xff]
      %v748 = vld [vmem:[%s230 + $0x18] sm:$0xff]
      %v749 = vld [vmem:[%s230 + $0x20] sm:$0xff]
      %v750 = vld [vmem:[%s230 + $0x28] sm:$0xff]
      %v751 = vld [vmem:[%s230 + $0x30] sm:$0xff]
      %v752 = vld [vmem:[%s230 + $0x38] sm:$0xff]
      %v753 = vld [vmem:[%s230 + $0x40] sm:$0xff]
      %v754 = vld [vmem:[%s230 + $0x48] sm:$0xff]
      %v755 = vld [vmem:[%s230 + $0x50] sm:$0xff]
      %v756 = vld [vmem:[%s230 + $0x58] sm:$0xff]
      %v757 = vld [vmem:[%s230 + $0x60] sm:$0xff]
      %v758 = vld [vmem:[%s230 + $0x68] sm:$0xff]
      %v759 = vld [vmem:[%s230 + $0x70] sm:$0xff]
      %v760 = vld [vmem:[%s230 + $0x78] sm:$0xff]
      %v761 = vadd.f32 %v729, %v745
      %v762 = vadd.f32 %v730, %v746
      %v763 = vadd.f32 %v731, %v747
      %v764 = vadd.f32 %v732, %v748
      %v765 = vadd.f32 %v733, %v749
      %v766 = vadd.f32 %v734, %v750
      %v767 = vadd.f32 %v735, %v751
      %v768 = vadd.f32 %v736, %v752
      %v769 = vadd.f32 %v737, %v753
      %v770 = vadd.f32 %v738, %v754
      %v771 = vadd.f32 %v739, %v755
      %v772 = vadd.f32 %v740, %v756
      %v773 = vadd.f32 %v741, %v757
      %v774 = vadd.f32 %v742, %v758
      %v775 = vadd.f32 %v743, %v759
      %v776 = vadd.f32 %v744, %v760
      %vm777 = vcmp.gt.f32.partialorder %v761, 0.0
      %vm778 = vcmp.gt.f32.partialorder %v762, 0.0
      %vm779 = vcmp.gt.f32.partialorder %v763, 0.0
      %vm780 = vcmp.gt.f32.partialorder %v764, 0.0
      %vm781 = vcmp.gt.f32.partialorder %v765, 0.0
      %vm782 = vcmp.gt.f32.partialorder %v766, 0.0
      %vm783 = vcmp.gt.f32.partialorder %v767, 0.0
      %vm784 = vcmp.gt.f32.partialorder %v768, 0.0
      %vm785 = vcmp.gt.f32.partialorder %v769, 0.0
      %vm786 = vcmp.gt.f32.partialorder %v770, 0.0
      %vm787 = vcmp.gt.f32.partialorder %v771, 0.0
      %vm788 = vcmp.gt.f32.partialorder %v772, 0.0
      %vm789 = vcmp.gt.f32.partialorder %v773, 0.0
      %vm790 = vcmp.gt.f32.partialorder %v774, 0.0
      %vm791 = vcmp.gt.f32.partialorder %v775, 0.0
      %vm792 = vcmp.gt.f32.partialorder %v776, 0.0
      %v793 = vmul.f32 %v761, 0.2
      %v794 = vmul.f32 %v762, 0.2
      %v795 = vmul.f32 %v763, 0.2
      %v796 = vmul.f32 %v764, 0.2
      %v797 = vmul.f32 %v765, 0.2
      %v798 = vmul.f32 %v766, 0.2
      %v799 = vmul.f32 %v767, 0.2
      %v800 = vmul.f32 %v768, 0.2
      %v801 = vmul.f32 %v769, 0.2
      %v802 = vmul.f32 %v770, 0.2
      %v803 = vmul.f32 %v771, 0.2
      %v804 = vmul.f32 %v772, 0.2
      %v805 = vmul.f32 %v773, 0.2
      %v806 = vmul.f32 %v774, 0.2
      %v807 = vmul.f32 %v775, 0.2
      %v808 = vmul.f32 %v776, 0.2
      %v809 = vsel %vm777, %v761, %v793
      %v810 = vsel %vm778, %v762, %v794
      %v811 = vsel %vm779, %v763, %v795
      %v812 = vsel %vm780, %v764, %v796
      %v813 = vsel %vm781, %v765, %v797
      %v814 = vsel %vm782, %v766, %v798
      %v815 = vsel %vm783, %v767, %v799
      %v816 = vsel %vm784, %v768, %v800
      %v817 = vsel %vm785, %v769, %v801
      %v818 = vsel %vm786, %v770, %v802
      %v819 = vsel %vm787, %v771, %v803
      %v820 = vsel %vm788, %v772, %v804
      %v821 = vsel %vm789, %v773, %v805
      %v822 = vsel %vm790, %v774, %v806
      %v823 = vsel %vm791, %v775, %v807
      %v824 = vsel %vm792, %v776, %v808
      %825 = vmax.xlane.f32.xlu0 %v809
      %v826 = vpop.xlane.xlu0 %825
      %827 = vmax.xlane.f32.xlu0 %v810
      %v828 = vpop.xlane.xlu0 %827
      %829 = vmax.xlane.f32.xlu0 %v811
      %v830 = vpop.xlane.xlu0 %829
      %831 = vmax.xlane.f32.xlu0 %v812
      %v832 = vpop.xlane.xlu0 %831
      %833 = vmax.xlane.f32.xlu0 %v813
      %v834 = vpop.xlane.xlu0 %833
      %835 = vmax.xlane.f32.xlu0 %v814
      %v836 = vpop.xlane.xlu0 %835
      %837 = vmax.xlane.f32.xlu0 %v815
      %v838 = vpop.xlane.xlu0 %837
      %839 = vmax.xlane.f32.xlu0 %v816
      %v840 = vpop.xlane.xlu0 %839
      %841 = vmax.xlane.f32.xlu0 %v817
      %v842 = vpop.xlane.xlu0 %841
      %843 = vmax.xlane.f32.xlu0 %v818
      %v844 = vpop.xlane.xlu0 %843
      %845 = vmax.xlane.f32.xlu0 %v819
      %v846 = vpop.xlane.xlu0 %845
      %847 = vmax.xlane.f32.xlu0 %v820
      %v848 = vpop.xlane.xlu0 %847
      %849 = vmax.xlane.f32.xlu0 %v821
      %v850 = vpop.xlane.xlu0 %849
      %851 = vmax.xlane.f32.xlu0 %v822
      %v852 = vpop.xlane.xlu0 %851
      %853 = vmax.xlane.f32.xlu0 %v823
      %v854 = vpop.xlane.xlu0 %853
      %855 = vmax.xlane.f32.xlu0 %v824
      %v856 = vpop.xlane.xlu0 %855
      %v857 = vsub.f32 %v809, %v826
      %v858 = vsub.f32 %v810, %v828
      %v859 = vsub.f32 %v811, %v830
      %v860 = vsub.f32 %v812, %v832
      %v861 = vsub.f32 %v813, %v834
      %v862 = vsub.f32 %v814, %v836
      %v863 = vsub.f32 %v815, %v838
      %v864 = vsub.f32 %v816, %v840
      %v865 = vsub.f32 %v817, %v842
      %v866 = vsub.f32 %v818, %v844
      %v867 = vsub.f32 %v819, %v846
      %v868 = vsub.f32 %v820, %v848
      %v869 = vsub.f32 %v821, %v850
      %v870 = vsub.f32 %v822, %v852
      %v871 = vsub.f32 %v823, %v854
      %v872 = vsub.f32 %v824, %v856
      %v873 = vmul.f32 %v857, 1.442695
      %v874 = vpow.pop %v873
      %v875 = vmul.f32 %v858, 1.442695
      %v876 = vpow.pop %v875
      %v877 = vmul.f32 %v859, 1.442695
      %v878 = vpow.pop %v877
      %v879 = vmul.f32 %v860, 1.442695
      %v880 = vpow.pop %v879
      %v881 = vmul.f32 %v861, 1.442695
      %v882 = vpow.pop %v881
      %v883 = vmul.f32 %v862, 1.442695
      %v884 = vpow.pop %v883
      %v885 = vmul.f32 %v863, 1.442695
      %v886 = vpow.pop %v885
      %v887 = vmul.f32 %v864, 1.442695
      %v888 = vpow.pop %v887
      %v889 = vmul.f32 %v865, 1.442695
      %v890 = vpow.pop %v889
      %v891 = vmul.f32 %v866, 1.442695
      %v892 = vpow.pop %v891
      %v893 = vmul.f32 %v867, 1.442695
      %v894 = vpow.pop %v893
      %v895 = vmul.f32 %v868, 1.442695
      %v896 = vpow.pop %v895
      %v897 = vmul.f32 %v869, 1.442695
      %v898 = vpow.pop %v897
      %v899 = vmul.f32 %v870, 1.442695
      %v900 = vpow.pop %v899
      %v901 = vmul.f32 %v871, 1.442695
      %v902 = vpow.pop %v901
      %v903 = vmul.f32 %v872, 1.442695
      %v904 = vpow.pop %v903
      %905 = vadd.xlane.f32.xlu0 %v874
      %v906 = vpop.xlane.xlu0 %905
      %907 = vadd.xlane.f32.xlu0 %v876
      %v908 = vpop.xlane.xlu0 %907
      %909 = vadd.xlane.f32.xlu0 %v878
      %v910 = vpop.xlane.xlu0 %909
      %911 = vadd.xlane.f32.xlu0 %v880
      %v912 = vpop.xlane.xlu0 %911
      %913 = vadd.xlane.f32.xlu0 %v882
      %v914 = vpop.xlane.xlu0 %913
      %915 = vadd.xlane.f32.xlu0 %v884
      %v916 = vpop.xlane.xlu0 %915
      %917 = vadd.xlane.f32.xlu0 %v886
      %v918 = vpop.xlane.xlu0 %917
      %919 = vadd.xlane.f32.xlu0 %v888
      %v920 = vpop.xlane.xlu0 %919
      %921 = vadd.xlane.f32.xlu0 %v890
      %v922 = vpop.xlane.xlu0 %921
      %923 = vadd.xlane.f32.xlu0 %v892
      %v924 = vpop.xlane.xlu0 %923
      %925 = vadd.xlane.f32.xlu0 %v894
      %v926 = vpop.xlane.xlu0 %925
      %927 = vadd.xlane.f32.xlu0 %v896
      %v928 = vpop.xlane.xlu0 %927
      %929 = vadd.xlane.f32.xlu0 %v898
      %v930 = vpop.xlane.xlu0 %929
      %931 = vadd.xlane.f32.xlu0 %v900
      %v932 = vpop.xlane.xlu0 %931
      %933 = vadd.xlane.f32.xlu0 %v902
      %v934 = vpop.xlane.xlu0 %933
      %935 = vadd.xlane.f32.xlu0 %v904
      %v936 = vpop.xlane.xlu0 %935
      %v937 = vrcp.pop %v906
      %v938 = vrcp.pop %v908
      %v939 = vrcp.pop %v910
      %v940 = vrcp.pop %v912
      %v941 = vrcp.pop %v914
      %v942 = vrcp.pop %v916
      %v943 = vrcp.pop %v918
      %v944 = vrcp.pop %v920
      %v945 = vrcp.pop %v922
      %v946 = vrcp.pop %v924
      %v947 = vrcp.pop %v926
      %v948 = vrcp.pop %v928
      %v949 = vrcp.pop %v930
      %v950 = vrcp.pop %v932
      %v951 = vrcp.pop %v934
      %v952 = vrcp.pop %v936
      %v953 = vmul.f32 %v874, %v937
      %v954 = vmul.f32 %v876, %v938
      %v955 = vmul.f32 %v878, %v939
      %v956 = vmul.f32 %v880, %v940
      %v957 = vmul.f32 %v882, %v941
      %v958 = vmul.f32 %v884, %v942
      %v959 = vmul.f32 %v886, %v943
      %v960 = vmul.f32 %v888, %v944
      %v961 = vmul.f32 %v890, %v945
      %v962 = vmul.f32 %v892, %v946
      %v963 = vmul.f32 %v894, %v947
      %v964 = vmul.f32 %v896, %v948
      %v965 = vmul.f32 %v898, %v949
      %v966 = vmul.f32 %v900, %v950
      %v967 = vmul.f32 %v902, %v951
      %v968 = vmul.f32 %v904, %v952
      %v969 = vld [vmem:[%s3 + $0x118] sm:$0x1]
      %v970 = vlaneseq
      %v971 = vshrl.u32 %v970, 7
      %v972 = vsub.s32 0, %v971
      %v973 = vrot.slane %v969, %v972
      %974 = vmatprep.subr.mxu0 0.0
      %975 = vmatpush1.msra.mxu0 %v598
      %976 = vmatprep.subr.mxu0 0.0
      %977 = vmatpush1.msra.mxu0 %v593
      %978 = vmatprep.subr.mxu0 0.0
      %979 = vmatpush1.msra.mxu0 %v588
      %980 = vmatprep.subr.mxu0 0.0
      %981 = vmatpush1.msra.mxu0 %v583
      %982 = vmatprep.subr.mxu0 0.0
      %983 = vmatpush1.msra.mxu0 %v578
      %984 = vmatprep.subr.mxu0 0.0
      %985 = vmatpush1.msra.mxu0 %v573
      %986 = vmatprep.subr.mxu0 0.0
      %987 = vmatpush1.msra.mxu0 %v568
      %988 = vmatprep.subr.mxu0 0.0
      %989 = vmatpush1.msra.mxu0 %v563
      %990 = vmatprep.subr.mxu0 0.0
      %991 = vmatpush1.msra.mxu0 %v558
      %992 = vmatprep.subr.mxu0 0.0
      %993 = vmatpush1.msra.mxu0 %v553
      %994 = vmatprep.subr.mxu0 0.0
      %995 = vmatpush1.msra.mxu0 %v548
      %996 = vmatprep.subr.mxu0 0.0
      %997 = vmatpush1.msra.mxu0 %v543
      %998 = vmatprep.subr.mxu0 0.0
      %999 = vmatpush1.msra.mxu0 %v538
      %1000 = vmatprep.subr.mxu0 0.0
      %1001 = vmatpush1.msra.mxu0 %v533
      %1002 = vmatprep.subr.mxu0 0.0
      %1003 = vmatpush1.msra.mxu0 %v528
      %1004 = vmatprep.subr.mxu0 0.0
      %1005 = vmatpush1.msra.mxu0 %v523
      %1006 = vmatprep.subr.mxu0 0.0
      %1007 = vmatpush2.msra.mxu0 0.0
      %1008 = vmatprep.subr.mxu0 0.0
      %1009 = vmatpush2.msra.mxu0 0.0
      %1010 = vmatprep.subr.mxu0 0.0
      %1011 = vmatpush2.msra.mxu0 0.0
      %1012 = vmatprep.subr.mxu0 0.0
      %1013 = vmatpush2.msra.mxu0 0.0
      %1014 = vmatprep.subr.mxu0 0.0
      %1015 = vmatpush2.msra.mxu0 0.0
      %1016 = vmatprep.subr.mxu0 0.0
      %1017 = vmatpush2.msra.mxu0 0.0
      %1018 = vmatprep.subr.mxu0 0.0
      %1019 = vmatpush2.msra.mxu0 0.0
      %1020 = vmatprep.subr.mxu0 0.0
      %1021 = vmatpush2.msra.mxu0 0.0
      %1022 = vmatprep.subr.mxu0 0.0
      %1023 = vmatpush2.msra.mxu0 0.0
      %1024 = vmatprep.subr.mxu0 0.0
      %1025 = vmatpush2.msra.mxu0 0.0
      %1026 = vmatprep.subr.mxu0 0.0
      %1027 = vmatpush2.msra.mxu0 0.0
      %1028 = vmatprep.subr.mxu0 0.0
      %1029 = vmatpush2.msra.mxu0 0.0
      %1030 = vmatprep.subr.mxu0 0.0
      %1031 = vmatpush2.msra.mxu0 0.0
      %1032 = vmatprep.subr.mxu0 0.0
      %1033 = vmatpush2.msra.mxu0 0.0
      %1034 = vmatprep.subr.mxu0 0.0
      %1035 = vmatpush2.msra.mxu0 0.0
      %1036 = vmatprep.subr.mxu0 0.0
      %1037 = vmatpush2.msra.mxu0 0.0
      %1038 = vmatprep.mubr.f32.mxu0 0.0
      %1039 = vmatmul.mubr.f32.gmra.mxu0 %v953
      %v1040 = vpop.f32.mrf.mxu0
      %v1041 = vadd.f32 %v973, %v1040
      %v1042 = vpop.f32.mrf.mxu0
      %1043 = vmatprep.mubr.f32.mxu0 0.0
      %1044 = vmatmul.mubr.f32.gmra.mxu0 %v954
      %v1045 = vpop.f32.mrf.mxu0
      %v1046 = vadd.f32 %v973, %v1045
      %v1047 = vpop.f32.mrf.mxu0
      %1048 = vmatprep.mubr.f32.mxu0 0.0
      %1049 = vmatmul.mubr.f32.gmra.mxu0 %v955
      %v1050 = vpop.f32.mrf.mxu0
      %v1051 = vadd.f32 %v973, %v1050
      %v1052 = vpop.f32.mrf.mxu0
      %1053 = vmatprep.mubr.f32.mxu0 0.0
      %1054 = vmatmul.mubr.f32.gmra.mxu0 %v956
      %v1055 = vpop.f32.mrf.mxu0
      %v1056 = vadd.f32 %v973, %v1055
      %v1057 = vpop.f32.mrf.mxu0
      %1058 = vmatprep.mubr.f32.mxu0 0.0
      %1059 = vmatmul.mubr.f32.gmra.mxu0 %v957
      %v1060 = vpop.f32.mrf.mxu0
      %v1061 = vadd.f32 %v973, %v1060
      %v1062 = vpop.f32.mrf.mxu0
      %1063 = vmatprep.mubr.f32.mxu0 0.0
      %1064 = vmatmul.mubr.f32.gmra.mxu0 %v958
      %v1065 = vpop.f32.mrf.mxu0
      %v1066 = vadd.f32 %v973, %v1065
      %v1067 = vpop.f32.mrf.mxu0
      %1068 = vmatprep.mubr.f32.mxu0 0.0
      %1069 = vmatmul.mubr.f32.gmra.mxu0 %v959
      %v1070 = vpop.f32.mrf.mxu0
      %v1071 = vadd.f32 %v973, %v1070
      %v1072 = vpop.f32.mrf.mxu0
      %1073 = vmatprep.mubr.f32.mxu0 0.0
      %1074 = vmatmul.mubr.f32.gmra.mxu0 %v960
      %v1075 = vpop.f32.mrf.mxu0
      %v1076 = vadd.f32 %v973, %v1075
      %v1077 = vpop.f32.mrf.mxu0
      %1078 = vmatprep.mubr.f32.mxu0 0.0
      %1079 = vmatmul.mubr.f32.gmra.mxu0 %v961
      %v1080 = vpop.f32.mrf.mxu0
      %v1081 = vadd.f32 %v973, %v1080
      %v1082 = vpop.f32.mrf.mxu0
      %1083 = vmatprep.mubr.f32.mxu0 0.0
      %1084 = vmatmul.mubr.f32.gmra.mxu0 %v962
      %v1085 = vpop.f32.mrf.mxu0
      %v1086 = vadd.f32 %v973, %v1085
      %v1087 = vpop.f32.mrf.mxu0
      %1088 = vmatprep.mubr.f32.mxu0 0.0
      %1089 = vmatmul.mubr.f32.gmra.mxu0 %v963
      %v1090 = vpop.f32.mrf.mxu0
      %v1091 = vadd.f32 %v973, %v1090
      %v1092 = vpop.f32.mrf.mxu0
      %1093 = vmatprep.mubr.f32.mxu0 0.0
      %1094 = vmatmul.mubr.f32.gmra.mxu0 %v964
      %v1095 = vpop.f32.mrf.mxu0
      %v1096 = vadd.f32 %v973, %v1095
      %v1097 = vpop.f32.mrf.mxu0
      %1098 = vmatprep.mubr.f32.mxu0 0.0
      %1099 = vmatmul.mubr.f32.gmra.mxu0 %v965
      %v1100 = vpop.f32.mrf.mxu0
      %v1101 = vadd.f32 %v973, %v1100
      %v1102 = vpop.f32.mrf.mxu0
      %1103 = vmatprep.mubr.f32.mxu0 0.0
      %1104 = vmatmul.mubr.f32.gmra.mxu0 %v966
      %v1105 = vpop.f32.mrf.mxu0
      %v1106 = vadd.f32 %v973, %v1105
      %v1107 = vpop.f32.mrf.mxu0
      %1108 = vmatprep.mubr.f32.mxu0 0.0
      %1109 = vmatmul.mubr.f32.gmra.mxu0 %v967
      %v1110 = vpop.f32.mrf.mxu0
      %v1111 = vadd.f32 %v973, %v1110
      %v1112 = vpop.f32.mrf.mxu0
      %1113 = vmatprep.mubr.f32.mxu0 0.0
      %1114 = vmatmul.mubr.f32.gmra.mxu0 %v968
      %v1115 = vpop.f32.mrf.mxu0
      %v1116 = vadd.f32 %v973, %v1115
      %v1117 = vpop.f32.mrf.mxu0
      %1118 = vdwg.mxu0
      %v1119 = vmax.f32 %v1041, 0.0
      %v1120 = vmax.f32 %v1046, 0.0
      %v1121 = vmax.f32 %v1051, 0.0
      %v1122 = vmax.f32 %v1056, 0.0
      %v1123 = vmax.f32 %v1061, 0.0
      %v1124 = vmax.f32 %v1066, 0.0
      %v1125 = vmax.f32 %v1071, 0.0
      %v1126 = vmax.f32 %v1076, 0.0
      %v1127 = vmax.f32 %v1081, 0.0
      %v1128 = vmax.f32 %v1086, 0.0
      %v1129 = vmax.f32 %v1091, 0.0
      %v1130 = vmax.f32 %v1096, 0.0
      %v1131 = vmax.f32 %v1101, 0.0
      %v1132 = vmax.f32 %v1106, 0.0
      %v1133 = vmax.f32 %v1111, 0.0
      %v1134 = vmax.f32 %v1116, 0.0
      %v1135 = vld [vmem:[%s3 + $0x120] sm:$0xff]
      %v1136 = vld [vmem:[%s3 + $0x128] sm:$0xff]
      %v1137 = vld [vmem:[%s3 + $0x130] sm:$0xff]
      %v1138 = vld [vmem:[%s3 + $0x138] sm:$0xff]
      %v1139 = vld [vmem:[%s3 + $0x140] sm:$0xff]
      %v1140 = vld [vmem:[%s3 + $0x148] sm:$0xff]
      %v1141 = vld [vmem:[%s3 + $0x150] sm:$0xff]
      %v1142 = vld [vmem:[%s3 + $0x158] sm:$0xff]
      %v1143 = vld [vmem:[%s3 + $0x160] sm:$0xff]
      %v1144 = vld [vmem:[%s3 + $0x168] sm:$0xff]
      %v1145 = vld [vmem:[%s3 + $0x170] sm:$0xff]
      %v1146 = vld [vmem:[%s3 + $0x178] sm:$0xff]
      %v1147 = vld [vmem:[%s3 + $0x180] sm:$0xff]
      %v1148 = vld [vmem:[%s3 + $0x188] sm:$0xff]
      %v1149 = vld [vmem:[%s3 + $0x190] sm:$0xff]
      %v1150 = vld [vmem:[%s3 + $0x198] sm:$0xff]
      %1151 = vmatprep.subr.mxu0 0.0
      %1152 = vmatpush1.msra.mxu0 %v1150
      %1153 = vmatprep.subr.mxu0 0.0
      %1154 = vmatpush1.msra.mxu0 %v1149
      %1155 = vmatprep.subr.mxu0 0.0
      %1156 = vmatpush1.msra.mxu0 %v1148
      %1157 = vmatprep.subr.mxu0 0.0
      %1158 = vmatpush1.msra.mxu0 %v1147
      %1159 = vmatprep.subr.mxu0 0.0
      %1160 = vmatpush1.msra.mxu0 %v1146
      %1161 = vmatprep.subr.mxu0 0.0
      %1162 = vmatpush1.msra.mxu0 %v1145
      %1163 = vmatprep.subr.mxu0 0.0
      %1164 = vmatpush1.msra.mxu0 %v1144
      %1165 = vmatprep.subr.mxu0 0.0
      %1166 = vmatpush1.msra.mxu0 %v1143
      %1167 = vmatprep.subr.mxu0 0.0
      %1168 = vmatpush1.msra.mxu0 %v1142
      %1169 = vmatprep.subr.mxu0 0.0
      %1170 = vmatpush1.msra.mxu0 %v1141
      %1171 = vmatprep.subr.mxu0 0.0
      %1172 = vmatpush1.msra.mxu0 %v1140
      %1173 = vmatprep.subr.mxu0 0.0
      %1174 = vmatpush1.msra.mxu0 %v1139
      %1175 = vmatprep.subr.mxu0 0.0
      %1176 = vmatpush1.msra.mxu0 %v1138
      %1177 = vmatprep.subr.mxu0 0.0
      %1178 = vmatpush1.msra.mxu0 %v1137
      %1179 = vmatprep.subr.mxu0 0.0
      %1180 = vmatpush1.msra.mxu0 %v1136
      %1181 = vmatprep.subr.mxu0 0.0
      %1182 = vmatpush1.msra.mxu0 %v1135
      %1183 = vmatprep.subr.mxu0 0.0
      %1184 = vmatpush2.msra.mxu0 0.0
      %1185 = vmatprep.subr.mxu0 0.0
      %1186 = vmatpush2.msra.mxu0 0.0
      %1187 = vmatprep.subr.mxu0 0.0
      %1188 = vmatpush2.msra.mxu0 0.0
      %1189 = vmatprep.subr.mxu0 0.0
      %1190 = vmatpush2.msra.mxu0 0.0
      %1191 = vmatprep.subr.mxu0 0.0
      %1192 = vmatpush2.msra.mxu0 0.0
      %1193 = vmatprep.subr.mxu0 0.0
      %1194 = vmatpush2.msra.mxu0 0.0
      %1195 = vmatprep.subr.mxu0 0.0
      %1196 = vmatpush2.msra.mxu0 0.0
      %1197 = vmatprep.subr.mxu0 0.0
      %1198 = vmatpush2.msra.mxu0 0.0
      %1199 = vmatprep.subr.mxu0 0.0
      %1200 = vmatpush2.msra.mxu0 0.0
      %1201 = vmatprep.subr.mxu0 0.0
      %1202 = vmatpush2.msra.mxu0 0.0
      %1203 = vmatprep.subr.mxu0 0.0
      %1204 = vmatpush2.msra.mxu0 0.0
      %1205 = vmatprep.subr.mxu0 0.0
      %1206 = vmatpush2.msra.mxu0 0.0
      %1207 = vmatprep.subr.mxu0 0.0
      %1208 = vmatpush2.msra.mxu0 0.0
      %1209 = vmatprep.subr.mxu0 0.0
      %1210 = vmatpush2.msra.mxu0 0.0
      %1211 = vmatprep.subr.mxu0 0.0
      %1212 = vmatpush2.msra.mxu0 0.0
      %1213 = vmatprep.subr.mxu0 0.0
      %1214 = vmatpush2.msra.mxu0 0.0
      %1215 = vmatprep.mubr.f32.mxu0 0.0
      %1216 = vmatmul.mubr.f32.gmra.mxu0 %v1119
      %v1217 = vpop.f32.mrf.mxu0
      %v1218 = vadd.f32 0.0, %v1217
      %v1219 = vpop.f32.mrf.mxu0
      %1220 = vmatprep.mubr.f32.mxu0 0.0
      %1221 = vmatmul.mubr.f32.gmra.mxu0 %v1120
      %v1222 = vpop.f32.mrf.mxu0
      %v1223 = vadd.f32 0.0, %v1222
      %v1224 = vpop.f32.mrf.mxu0
      %1225 = vmatprep.mubr.f32.mxu0 0.0
      %1226 = vmatmul.mubr.f32.gmra.mxu0 %v1121
      %v1227 = vpop.f32.mrf.mxu0
      %v1228 = vadd.f32 0.0, %v1227
      %v1229 = vpop.f32.mrf.mxu0
      %1230 = vmatprep.mubr.f32.mxu0 0.0
      %1231 = vmatmul.mubr.f32.gmra.mxu0 %v1122
      %v1232 = vpop.f32.mrf.mxu0
      %v1233 = vadd.f32 0.0, %v1232
      %v1234 = vpop.f32.mrf.mxu0
      %1235 = vmatprep.mubr.f32.mxu0 0.0
      %1236 = vmatmul.mubr.f32.gmra.mxu0 %v1123
      %v1237 = vpop.f32.mrf.mxu0
      %v1238 = vadd.f32 0.0, %v1237
      %v1239 = vpop.f32.mrf.mxu0
      %1240 = vmatprep.mubr.f32.mxu0 0.0
      %1241 = vmatmul.mubr.f32.gmra.mxu0 %v1124
      %v1242 = vpop.f32.mrf.mxu0
      %v1243 = vadd.f32 0.0, %v1242
      %v1244 = vpop.f32.mrf.mxu0
      %1245 = vmatprep.mubr.f32.mxu0 0.0
      %1246 = vmatmul.mubr.f32.gmra.mxu0 %v1125
      %v1247 = vpop.f32.mrf.mxu0
      %v1248 = vadd.f32 0.0, %v1247
      %v1249 = vpop.f32.mrf.mxu0
      %1250 = vmatprep.mubr.f32.mxu0 0.0
      %1251 = vmatmul.mubr.f32.gmra.mxu0 %v1126
      %v1252 = vpop.f32.mrf.mxu0
      %v1253 = vadd.f32 0.0, %v1252
      %v1254 = vpop.f32.mrf.mxu0
      %1255 = vmatprep.mubr.f32.mxu0 0.0
      %1256 = vmatmul.mubr.f32.gmra.mxu0 %v1127
      %v1257 = vpop.f32.mrf.mxu0
      %v1258 = vadd.f32 0.0, %v1257
      %v1259 = vpop.f32.mrf.mxu0
      %1260 = vmatprep.mubr.f32.mxu0 0.0
      %1261 = vmatmul.mubr.f32.gmra.mxu0 %v1128
      %v1262 = vpop.f32.mrf.mxu0
      %v1263 = vadd.f32 0.0, %v1262
      %v1264 = vpop.f32.mrf.mxu0
      %1265 = vmatprep.mubr.f32.mxu0 0.0
      %1266 = vmatmul.mubr.f32.gmra.mxu0 %v1129
      %v1267 = vpop.f32.mrf.mxu0
      %v1268 = vadd.f32 0.0, %v1267
      %v1269 = vpop.f32.mrf.mxu0
      %1270 = vmatprep.mubr.f32.mxu0 0.0
      %1271 = vmatmul.mubr.f32.gmra.mxu0 %v1130
      %v1272 = vpop.f32.mrf.mxu0
      %v1273 = vadd.f32 0.0, %v1272
      %v1274 = vpop.f32.mrf.mxu0
      %1275 = vmatprep.mubr.f32.mxu0 0.0
      %1276 = vmatmul.mubr.f32.gmra.mxu0 %v1131
      %v1277 = vpop.f32.mrf.mxu0
      %v1278 = vadd.f32 0.0, %v1277
      %v1279 = vpop.f32.mrf.mxu0
      %1280 = vmatprep.mubr.f32.mxu0 0.0
      %1281 = vmatmul.mubr.f32.gmra.mxu0 %v1132
      %v1282 = vpop.f32.mrf.mxu0
      %v1283 = vadd.f32 0.0, %v1282
      %v1284 = vpop.f32.mrf.mxu0
      %1285 = vmatprep.mubr.f32.mxu0 0.0
      %1286 = vmatmul.mubr.f32.gmra.mxu0 %v1133
      %v1287 = vpop.f32.mrf.mxu0
      %v1288 = vadd.f32 0.0, %v1287
      %v1289 = vpop.f32.mrf.mxu0
      %1290 = vmatprep.mubr.f32.mxu0 0.0
      %1291 = vmatmul.mubr.f32.gmra.mxu0 %v1134
      %v1292 = vpop.f32.mrf.mxu0
      %v1293 = vadd.f32 0.0, %v1292
      %v1294 = vpop.f32.mrf.mxu0
      %1295 = vdwg.mxu0
      %v1296 = vld [vmem:[%s3 + $0x1a0] sm:$0x1]
      %v1297 = vlaneseq
      %v1298 = vshrl.u32 %v1297, 7
      %v1299 = vsub.s32 0, %v1298
      %v1300 = vrot.slane %v1296, %v1299
      %v1301 = vmul.f32 %v1218, %v1300
      %v1302 = vmul.f32 %v1223, %v1300
      %v1303 = vmul.f32 %v1228, %v1300
      %v1304 = vmul.f32 %v1233, %v1300
      %v1305 = vmul.f32 %v1238, %v1300
      %v1306 = vmul.f32 %v1243, %v1300
      %v1307 = vmul.f32 %v1248, %v1300
      %v1308 = vmul.f32 %v1253, %v1300
      %v1309 = vmul.f32 %v1258, %v1300
      %v1310 = vmul.f32 %v1263, %v1300
      %v1311 = vmul.f32 %v1268, %v1300
      %v1312 = vmul.f32 %v1273, %v1300
      %v1313 = vmul.f32 %v1278, %v1300
      %v1314 = vmul.f32 %v1283, %v1300
      %v1315 = vmul.f32 %v1288, %v1300
      %v1316 = vmul.f32 %v1293, %v1300
      %1317 = vadd.xlane.f32.xlu0 %v1301
      %v1318 = vpop.xlane.xlu0 %1317
      %1319 = vadd.xlane.f32.xlu0 %v1302
      %v1320 = vpop.xlane.xlu0 %1319
      %1321 = vadd.xlane.f32.xlu0 %v1303
      %v1322 = vpop.xlane.xlu0 %1321
      %1323 = vadd.xlane.f32.xlu0 %v1304
      %v1324 = vpop.xlane.xlu0 %1323
      %1325 = vadd.xlane.f32.xlu0 %v1305
      %v1326 = vpop.xlane.xlu0 %1325
      %1327 = vadd.xlane.f32.xlu0 %v1306
      %v1328 = vpop.xlane.xlu0 %1327
      %1329 = vadd.xlane.f32.xlu0 %v1307
      %v1330 = vpop.xlane.xlu0 %1329
      %1331 = vadd.xlane.f32.xlu0 %v1308
      %v1332 = vpop.xlane.xlu0 %1331
      %1333 = vadd.xlane.f32.xlu0 %v1309
      %v1334 = vpop.xlane.xlu0 %1333
      %1335 = vadd.xlane.f32.xlu0 %v1310
      %v1336 = vpop.xlane.xlu0 %1335
      %1337 = vadd.xlane.f32.xlu0 %v1311
      %v1338 = vpop.xlane.xlu0 %1337
      %1339 = vadd.xlane.f32.xlu0 %v1312
      %v1340 = vpop.xlane.xlu0 %1339
      %1341 = vadd.xlane.f32.xlu0 %v1313
      %v1342 = vpop.xlane.xlu0 %1341
      %1343 = vadd.xlane.f32.xlu0 %v1314
      %v1344 = vpop.xlane.xlu0 %1343
      %1345 = vadd.xlane.f32.xlu0 %v1315
      %v1346 = vpop.xlane.xlu0 %1345
      %1347 = vadd.xlane.f32.xlu0 %v1316
      %v1348 = vpop.xlane.xlu0 %1347
      %v1349 = vld [vmem:[%s3 + $0x1a8] sm:$0x1]
      %1350 = vmatprep.subr.mxu0 0.0
      %1351 = vmatpush1.xpose.msra.mxu0 %v1293
      %1352 = vmatprep.subr.mxu0 0.0
      %1353 = vmatpush1.xpose.msra.mxu0 %v1288
      %1354 = vmatprep.subr.mxu0 0.0
      %1355 = vmatpush1.xpose.msra.mxu0 %v1283
      %1356 = vmatprep.subr.mxu0 0.0
      %1357 = vmatpush1.xpose.msra.mxu0 %v1278
      %1358 = vmatprep.subr.mxu0 0.0
      %1359 = vmatpush1.xpose.msra.mxu0 %v1273
      %1360 = vmatprep.subr.mxu0 0.0
      %1361 = vmatpush1.xpose.msra.mxu0 %v1268
      %1362 = vmatprep.subr.mxu0 0.0
      %1363 = vmatpush1.xpose.msra.mxu0 %v1263
      %1364 = vmatprep.subr.mxu0 0.0
      %1365 = vmatpush1.xpose.msra.mxu0 %v1258
      %1366 = vmatprep.subr.mxu0 0.0
      %1367 = vmatpush1.xpose.msra.mxu0 %v1253
      %1368 = vmatprep.subr.mxu0 0.0
      %1369 = vmatpush1.xpose.msra.mxu0 %v1248
      %1370 = vmatprep.subr.mxu0 0.0
      %1371 = vmatpush1.xpose.msra.mxu0 %v1243
      %1372 = vmatprep.subr.mxu0 0.0
      %1373 = vmatpush1.xpose.msra.mxu0 %v1238
      %1374 = vmatprep.subr.mxu0 0.0
      %1375 = vmatpush1.xpose.msra.mxu0 %v1233
      %1376 = vmatprep.subr.mxu0 0.0
      %1377 = vmatpush1.xpose.msra.mxu0 %v1228
      %1378 = vmatprep.subr.mxu0 0.0
      %1379 = vmatpush1.xpose.msra.mxu0 %v1223
      %1380 = vmatprep.subr.mxu0 0.0
      %1381 = vmatpush1.xpose.msra.mxu0 %v1218
      %1382 = vmatprep.subr.mxu0 0.0
      %1383 = vmatpush2.xpose.msra.mxu0 0.0
      %1384 = vmatprep.subr.mxu0 0.0
      %1385 = vmatpush2.xpose.msra.mxu0 0.0
      %1386 = vmatprep.subr.mxu0 0.0
      %1387 = vmatpush2.xpose.msra.mxu0 0.0
      %1388 = vmatprep.subr.mxu0 0.0
      %1389 = vmatpush2.xpose.msra.mxu0 0.0
      %1390 = vmatprep.subr.mxu0 0.0
      %1391 = vmatpush2.xpose.msra.mxu0 0.0
      %1392 = vmatprep.subr.mxu0 0.0
      %1393 = vmatpush2.xpose.msra.mxu0 0.0
      %1394 = vmatprep.subr.mxu0 0.0
      %1395 = vmatpush2.xpose.msra.mxu0 0.0
      %1396 = vmatprep.subr.mxu0 0.0
      %1397 = vmatpush2.xpose.msra.mxu0 0.0
      %1398 = vmatprep.subr.mxu0 0.0
      %1399 = vmatpush2.xpose.msra.mxu0 0.0
      %1400 = vmatprep.subr.mxu0 0.0
      %1401 = vmatpush2.xpose.msra.mxu0 0.0
      %1402 = vmatprep.subr.mxu0 0.0
      %1403 = vmatpush2.xpose.msra.mxu0 0.0
      %1404 = vmatprep.subr.mxu0 0.0
      %1405 = vmatpush2.xpose.msra.mxu0 0.0
      %1406 = vmatprep.subr.mxu0 0.0
      %1407 = vmatpush2.xpose.msra.mxu0 0.0
      %1408 = vmatprep.subr.mxu0 0.0
      %1409 = vmatpush2.xpose.msra.mxu0 0.0
      %1410 = vmatprep.subr.mxu0 0.0
      %1411 = vmatpush2.xpose.msra.mxu0 0.0
      %1412 = vmatprep.subr.mxu0 0.0
      %1413 = vmatpush2.xpose.msra.mxu0 0.0
      %1414 = vmatprep.mubr.f32.mxu0 0.0
      %1415 = vmatmul.mubr.f32.gmra.mxu0 %v1349
      %v1416 = vpop.f32.mrf.mxu0
      %v1417 = vadd.f32 0.0, %v1416
      %v1418 = vpop.f32.mrf.mxu0
      %1419 = vdwg.mxu0
      %v1420 = vlaneseq
      %v1421 = vshrl.u32 %v1420, 7
      %v1422 = vsub.s32 0, %v1421
      %v1423 = vrot.slane %v1417, %v1422
      %v1424 = vadd.f32 %v1318, %v1423
      %v1425 = vadd.f32 %v1320, %v1423
      %v1426 = vadd.f32 %v1322, %v1423
      %v1427 = vadd.f32 %v1324, %v1423
      %v1428 = vadd.f32 %v1326, %v1423
      %v1429 = vadd.f32 %v1328, %v1423
      %v1430 = vadd.f32 %v1330, %v1423
      %v1431 = vadd.f32 %v1332, %v1423
      %v1432 = vadd.f32 %v1334, %v1423
      %v1433 = vadd.f32 %v1336, %v1423
      %v1434 = vadd.f32 %v1338, %v1423
      %v1435 = vadd.f32 %v1340, %v1423
      %v1436 = vadd.f32 %v1342, %v1423
      %v1437 = vadd.f32 %v1344, %v1423
      %v1438 = vadd.f32 %v1346, %v1423
      %v1439 = vadd.f32 %v1348, %v1423
      %v1440 = vld [vmem:[%s236] sm:$0xff]
      %v1441 = vld [vmem:[%s236 + $0x8] sm:$0xff]
      %v1442 = vld [vmem:[%s236 + $0x10] sm:$0xff]
      %v1443 = vld [vmem:[%s236 + $0x18] sm:$0xff]
      %v1444 = vld [vmem:[%s236 + $0x20] sm:$0xff]
      %v1445 = vld [vmem:[%s236 + $0x28] sm:$0xff]
      %v1446 = vld [vmem:[%s236 + $0x30] sm:$0xff]
      %v1447 = vld [vmem:[%s236 + $0x38] sm:$0xff]
      %v1448 = vld [vmem:[%s236 + $0x40] sm:$0xff]
      %v1449 = vld [vmem:[%s236 + $0x48] sm:$0xff]
      %v1450 = vld [vmem:[%s236 + $0x50] sm:$0xff]
      %v1451 = vld [vmem:[%s236 + $0x58] sm:$0xff]
      %v1452 = vld [vmem:[%s236 + $0x60] sm:$0xff]
      %v1453 = vld [vmem:[%s236 + $0x68] sm:$0xff]
      %v1454 = vld [vmem:[%s236 + $0x70] sm:$0xff]
      %v1455 = vld [vmem:[%s236 + $0x78] sm:$0xff]
      %v1456 = vadd.f32 %v1424, %v1440
      %v1457 = vadd.f32 %v1425, %v1441
      %v1458 = vadd.f32 %v1426, %v1442
      %v1459 = vadd.f32 %v1427, %v1443
      %v1460 = vadd.f32 %v1428, %v1444
      %v1461 = vadd.f32 %v1429, %v1445
      %v1462 = vadd.f32 %v1430, %v1446
      %v1463 = vadd.f32 %v1431, %v1447
      %v1464 = vadd.f32 %v1432, %v1448
      %v1465 = vadd.f32 %v1433, %v1449
      %v1466 = vadd.f32 %v1434, %v1450
      %v1467 = vadd.f32 %v1435, %v1451
      %v1468 = vadd.f32 %v1436, %v1452
      %v1469 = vadd.f32 %v1437, %v1453
      %v1470 = vadd.f32 %v1438, %v1454
      %v1471 = vadd.f32 %v1439, %v1455
      %vm1472 = vcmp.gt.f32.partialorder %v1456, 0.0
      %vm1473 = vcmp.gt.f32.partialorder %v1457, 0.0
      %vm1474 = vcmp.gt.f32.partialorder %v1458, 0.0
      %vm1475 = vcmp.gt.f32.partialorder %v1459, 0.0
      %vm1476 = vcmp.gt.f32.partialorder %v1460, 0.0
      %vm1477 = vcmp.gt.f32.partialorder %v1461, 0.0
      %vm1478 = vcmp.gt.f32.partialorder %v1462, 0.0
      %vm1479 = vcmp.gt.f32.partialorder %v1463, 0.0
      %vm1480 = vcmp.gt.f32.partialorder %v1464, 0.0
      %vm1481 = vcmp.gt.f32.partialorder %v1465, 0.0
      %vm1482 = vcmp.gt.f32.partialorder %v1466, 0.0
      %vm1483 = vcmp.gt.f32.partialorder %v1467, 0.0
      %vm1484 = vcmp.gt.f32.partialorder %v1468, 0.0
      %vm1485 = vcmp.gt.f32.partialorder %v1469, 0.0
      %vm1486 = vcmp.gt.f32.partialorder %v1470, 0.0
      %vm1487 = vcmp.gt.f32.partialorder %v1471, 0.0
      %v1488 = vmul.f32 %v1456, 0.2
      %v1489 = vmul.f32 %v1457, 0.2
      %v1490 = vmul.f32 %v1458, 0.2
      %v1491 = vmul.f32 %v1459, 0.2
      %v1492 = vmul.f32 %v1460, 0.2
      %v1493 = vmul.f32 %v1461, 0.2
      %v1494 = vmul.f32 %v1462, 0.2
      %v1495 = vmul.f32 %v1463, 0.2
      %v1496 = vmul.f32 %v1464, 0.2
      %v1497 = vmul.f32 %v1465, 0.2
      %v1498 = vmul.f32 %v1466, 0.2
      %v1499 = vmul.f32 %v1467, 0.2
      %v1500 = vmul.f32 %v1468, 0.2
      %v1501 = vmul.f32 %v1469, 0.2
      %v1502 = vmul.f32 %v1470, 0.2
      %v1503 = vmul.f32 %v1471, 0.2
      %v1504 = vsel %vm1472, %v1456, %v1488
      %v1505 = vsel %vm1473, %v1457, %v1489
      %v1506 = vsel %vm1474, %v1458, %v1490
      %v1507 = vsel %vm1475, %v1459, %v1491
      %v1508 = vsel %vm1476, %v1460, %v1492
      %v1509 = vsel %vm1477, %v1461, %v1493
      %v1510 = vsel %vm1478, %v1462, %v1494
      %v1511 = vsel %vm1479, %v1463, %v1495
      %v1512 = vsel %vm1480, %v1464, %v1496
      %v1513 = vsel %vm1481, %v1465, %v1497
      %v1514 = vsel %vm1482, %v1466, %v1498
      %v1515 = vsel %vm1483, %v1467, %v1499
      %v1516 = vsel %vm1484, %v1468, %v1500
      %v1517 = vsel %vm1485, %v1469, %v1501
      %v1518 = vsel %vm1486, %v1470, %v1502
      %v1519 = vsel %vm1487, %v1471, %v1503
      %1520 = vmax.xlane.f32.xlu0 %v1504
      %v1521 = vpop.xlane.xlu0 %1520
      %1522 = vmax.xlane.f32.xlu0 %v1505
      %v1523 = vpop.xlane.xlu0 %1522
      %1524 = vmax.xlane.f32.xlu0 %v1506
      %v1525 = vpop.xlane.xlu0 %1524
      %1526 = vmax.xlane.f32.xlu0 %v1507
      %v1527 = vpop.xlane.xlu0 %1526
      %1528 = vmax.xlane.f32.xlu0 %v1508
      %v1529 = vpop.xlane.xlu0 %1528
      %1530 = vmax.xlane.f32.xlu0 %v1509
      %v1531 = vpop.xlane.xlu0 %1530
      %1532 = vmax.xlane.f32.xlu0 %v1510
      %v1533 = vpop.xlane.xlu0 %1532
      %1534 = vmax.xlane.f32.xlu0 %v1511
      %v1535 = vpop.xlane.xlu0 %1534
      %1536 = vmax.xlane.f32.xlu0 %v1512
      %v1537 = vpop.xlane.xlu0 %1536
      %1538 = vmax.xlane.f32.xlu0 %v1513
      %v1539 = vpop.xlane.xlu0 %1538
      %1540 = vmax.xlane.f32.xlu0 %v1514
      %v1541 = vpop.xlane.xlu0 %1540
      %1542 = vmax.xlane.f32.xlu0 %v1515
      %v1543 = vpop.xlane.xlu0 %1542
      %1544 = vmax.xlane.f32.xlu0 %v1516
      %v1545 = vpop.xlane.xlu0 %1544
      %1546 = vmax.xlane.f32.xlu0 %v1517
      %v1547 = vpop.xlane.xlu0 %1546
      %1548 = vmax.xlane.f32.xlu0 %v1518
      %v1549 = vpop.xlane.xlu0 %1548
      %1550 = vmax.xlane.f32.xlu0 %v1519
      %v1551 = vpop.xlane.xlu0 %1550
      %v1552 = vsub.f32 %v1504, %v1521
      %v1553 = vsub.f32 %v1505, %v1523
      %v1554 = vsub.f32 %v1506, %v1525
      %v1555 = vsub.f32 %v1507, %v1527
      %v1556 = vsub.f32 %v1508, %v1529
      %v1557 = vsub.f32 %v1509, %v1531
      %v1558 = vsub.f32 %v1510, %v1533
      %v1559 = vsub.f32 %v1511, %v1535
      %v1560 = vsub.f32 %v1512, %v1537
      %v1561 = vsub.f32 %v1513, %v1539
      %v1562 = vsub.f32 %v1514, %v1541
      %v1563 = vsub.f32 %v1515, %v1543
      %v1564 = vsub.f32 %v1516, %v1545
      %v1565 = vsub.f32 %v1517, %v1547
      %v1566 = vsub.f32 %v1518, %v1549
      %v1567 = vsub.f32 %v1519, %v1551
      %v1568 = vmul.f32 %v1552, 1.442695
      %v1569 = vpow.pop %v1568
      %v1570 = vmul.f32 %v1553, 1.442695
      %v1571 = vpow.pop %v1570
      %v1572 = vmul.f32 %v1554, 1.442695
      %v1573 = vpow.pop %v1572
      %v1574 = vmul.f32 %v1555, 1.442695
      %v1575 = vpow.pop %v1574
      %v1576 = vmul.f32 %v1556, 1.442695
      %v1577 = vpow.pop %v1576
      %v1578 = vmul.f32 %v1557, 1.442695
      %v1579 = vpow.pop %v1578
      %v1580 = vmul.f32 %v1558, 1.442695
      %v1581 = vpow.pop %v1580
      %v1582 = vmul.f32 %v1559, 1.442695
      %v1583 = vpow.pop %v1582
      %v1584 = vmul.f32 %v1560, 1.442695
      %v1585 = vpow.pop %v1584
      %v1586 = vmul.f32 %v1561, 1.442695
      %v1587 = vpow.pop %v1586
      %v1588 = vmul.f32 %v1562, 1.442695
      %v1589 = vpow.pop %v1588
      %v1590 = vmul.f32 %v1563, 1.442695
      %v1591 = vpow.pop %v1590
      %v1592 = vmul.f32 %v1564, 1.442695
      %v1593 = vpow.pop %v1592
      %v1594 = vmul.f32 %v1565, 1.442695
      %v1595 = vpow.pop %v1594
      %v1596 = vmul.f32 %v1566, 1.442695
      %v1597 = vpow.pop %v1596
      %v1598 = vmul.f32 %v1567, 1.442695
      %v1599 = vpow.pop %v1598
      %1600 = vadd.xlane.f32.xlu0 %v1569
      %v1601 = vpop.xlane.xlu0 %1600
      %1602 = vadd.xlane.f32.xlu0 %v1571
      %v1603 = vpop.xlane.xlu0 %1602
      %1604 = vadd.xlane.f32.xlu0 %v1573
      %v1605 = vpop.xlane.xlu0 %1604
      %1606 = vadd.xlane.f32.xlu0 %v1575
      %v1607 = vpop.xlane.xlu0 %1606
      %1608 = vadd.xlane.f32.xlu0 %v1577
      %v1609 = vpop.xlane.xlu0 %1608
      %1610 = vadd.xlane.f32.xlu0 %v1579
      %v1611 = vpop.xlane.xlu0 %1610
      %1612 = vadd.xlane.f32.xlu0 %v1581
      %v1613 = vpop.xlane.xlu0 %1612
      %1614 = vadd.xlane.f32.xlu0 %v1583
      %v1615 = vpop.xlane.xlu0 %1614
      %1616 = vadd.xlane.f32.xlu0 %v1585
      %v1617 = vpop.xlane.xlu0 %1616
      %1618 = vadd.xlane.f32.xlu0 %v1587
      %v1619 = vpop.xlane.xlu0 %1618
      %1620 = vadd.xlane.f32.xlu0 %v1589
      %v1621 = vpop.xlane.xlu0 %1620
      %1622 = vadd.xlane.f32.xlu0 %v1591
      %v1623 = vpop.xlane.xlu0 %1622
      %1624 = vadd.xlane.f32.xlu0 %v1593
      %v1625 = vpop.xlane.xlu0 %1624
      %1626 = vadd.xlane.f32.xlu0 %v1595
      %v1627 = vpop.xlane.xlu0 %1626
      %1628 = vadd.xlane.f32.xlu0 %v1597
      %v1629 = vpop.xlane.xlu0 %1628
      %1630 = vadd.xlane.f32.xlu0 %v1599
      %v1631 = vpop.xlane.xlu0 %1630
      %v1632 = vrcp.pop %v1601
      %v1633 = vrcp.pop %v1603
      %v1634 = vrcp.pop %v1605
      %v1635 = vrcp.pop %v1607
      %v1636 = vrcp.pop %v1609
      %v1637 = vrcp.pop %v1611
      %v1638 = vrcp.pop %v1613
      %v1639 = vrcp.pop %v1615
      %v1640 = vrcp.pop %v1617
      %v1641 = vrcp.pop %v1619
      %v1642 = vrcp.pop %v1621
      %v1643 = vrcp.pop %v1623
      %v1644 = vrcp.pop %v1625
      %v1645 = vrcp.pop %v1627
      %v1646 = vrcp.pop %v1629
      %v1647 = vrcp.pop %v1631
      %v1648 = vmul.f32 %v1569, %v1632
      %v1649 = vmul.f32 %v1571, %v1633
      %v1650 = vmul.f32 %v1573, %v1634
      %v1651 = vmul.f32 %v1575, %v1635
      %v1652 = vmul.f32 %v1577, %v1636
      %v1653 = vmul.f32 %v1579, %v1637
      %v1654 = vmul.f32 %v1581, %v1638
      %v1655 = vmul.f32 %v1583, %v1639
      %v1656 = vmul.f32 %v1585, %v1640
      %v1657 = vmul.f32 %v1587, %v1641
      %v1658 = vmul.f32 %v1589, %v1642
      %v1659 = vmul.f32 %v1591, %v1643
      %v1660 = vmul.f32 %v1593, %v1644
      %v1661 = vmul.f32 %v1595, %v1645
      %v1662 = vmul.f32 %v1597, %v1646
      %v1663 = vmul.f32 %v1599, %v1647
      %v1664 = vld [vmem:[%s3 + $0x1b0] sm:$0x1]
      %v1665 = vlaneseq
      %v1666 = vshrl.u32 %v1665, 7
      %v1667 = vsub.s32 0, %v1666
      %v1668 = vrot.slane %v1664, %v1667
      %1669 = vmatprep.subr.mxu0 0.0
      %1670 = vmatpush1.msra.mxu0 %v1293
      %1671 = vmatprep.subr.mxu0 0.0
      %1672 = vmatpush1.msra.mxu0 %v1288
      %1673 = vmatprep.subr.mxu0 0.0
      %1674 = vmatpush1.msra.mxu0 %v1283
      %1675 = vmatprep.subr.mxu0 0.0
      %1676 = vmatpush1.msra.mxu0 %v1278
      %1677 = vmatprep.subr.mxu0 0.0
      %1678 = vmatpush1.msra.mxu0 %v1273
      %1679 = vmatprep.subr.mxu0 0.0
      %1680 = vmatpush1.msra.mxu0 %v1268
      %1681 = vmatprep.subr.mxu0 0.0
      %1682 = vmatpush1.msra.mxu0 %v1263
      %1683 = vmatprep.subr.mxu0 0.0
      %1684 = vmatpush1.msra.mxu0 %v1258
      %1685 = vmatprep.subr.mxu0 0.0
      %1686 = vmatpush1.msra.mxu0 %v1253
      %1687 = vmatprep.subr.mxu0 0.0
      %1688 = vmatpush1.msra.mxu0 %v1248
      %1689 = vmatprep.subr.mxu0 0.0
      %1690 = vmatpush1.msra.mxu0 %v1243
      %1691 = vmatprep.subr.mxu0 0.0
      %1692 = vmatpush1.msra.mxu0 %v1238
      %1693 = vmatprep.subr.mxu0 0.0
      %1694 = vmatpush1.msra.mxu0 %v1233
      %1695 = vmatprep.subr.mxu0 0.0
      %1696 = vmatpush1.msra.mxu0 %v1228
      %1697 = vmatprep.subr.mxu0 0.0
      %1698 = vmatpush1.msra.mxu0 %v1223
      %1699 = vmatprep.subr.mxu0 0.0
      %1700 = vmatpush1.msra.mxu0 %v1218
      %1701 = vmatprep.subr.mxu0 0.0
      %1702 = vmatpush2.msra.mxu0 0.0
      %1703 = vmatprep.subr.mxu0 0.0
      %1704 = vmatpush2.msra.mxu0 0.0
      %1705 = vmatprep.subr.mxu0 0.0
      %1706 = vmatpush2.msra.mxu0 0.0
      %1707 = vmatprep.subr.mxu0 0.0
      %1708 = vmatpush2.msra.mxu0 0.0
      %1709 = vmatprep.subr.mxu0 0.0
      %1710 = vmatpush2.msra.mxu0 0.0
      %1711 = vmatprep.subr.mxu0 0.0
      %1712 = vmatpush2.msra.mxu0 0.0
      %1713 = vmatprep.subr.mxu0 0.0
      %1714 = vmatpush2.msra.mxu0 0.0
      %1715 = vmatprep.subr.mxu0 0.0
      %1716 = vmatpush2.msra.mxu0 0.0
      %1717 = vmatprep.subr.mxu0 0.0
      %1718 = vmatpush2.msra.mxu0 0.0
      %1719 = vmatprep.subr.mxu0 0.0
      %1720 = vmatpush2.msra.mxu0 0.0
      %1721 = vmatprep.subr.mxu0 0.0
      %1722 = vmatpush2.msra.mxu0 0.0
      %1723 = vmatprep.subr.mxu0 0.0
      %1724 = vmatpush2.msra.mxu0 0.0
      %1725 = vmatprep.subr.mxu0 0.0
      %1726 = vmatpush2.msra.mxu0 0.0
      %1727 = vmatprep.subr.mxu0 0.0
      %1728 = vmatpush2.msra.mxu0 0.0
      %1729 = vmatprep.subr.mxu0 0.0
      %1730 = vmatpush2.msra.mxu0 0.0
      %1731 = vmatprep.subr.mxu0 0.0
      %1732 = vmatpush2.msra.mxu0 0.0
      %1733 = vmatprep.mubr.f32.mxu0 0.0
      %1734 = vmatmul.mubr.f32.gmra.mxu0 %v1648
      %v1735 = vpop.f32.mrf.mxu0
      %v1736 = vadd.f32 %v1668, %v1735
      %v1737 = vpop.f32.mrf.mxu0
      %1738 = vmatprep.mubr.f32.mxu0 0.0
      %1739 = vmatmul.mubr.f32.gmra.mxu0 %v1649
      %v1740 = vpop.f32.mrf.mxu0
      %v1741 = vadd.f32 %v1668, %v1740
      %v1742 = vpop.f32.mrf.mxu0
      %1743 = vmatprep.mubr.f32.mxu0 0.0
      %1744 = vmatmul.mubr.f32.gmra.mxu0 %v1650
      %v1745 = vpop.f32.mrf.mxu0
      %v1746 = vadd.f32 %v1668, %v1745
      %v1747 = vpop.f32.mrf.mxu0
      %1748 = vmatprep.mubr.f32.mxu0 0.0
      %1749 = vmatmul.mubr.f32.gmra.mxu0 %v1651
      %v1750 = vpop.f32.mrf.mxu0
      %v1751 = vadd.f32 %v1668, %v1750
      %v1752 = vpop.f32.mrf.mxu0
      %1753 = vmatprep.mubr.f32.mxu0 0.0
      %1754 = vmatmul.mubr.f32.gmra.mxu0 %v1652
      %v1755 = vpop.f32.mrf.mxu0
      %v1756 = vadd.f32 %v1668, %v1755
      %v1757 = vpop.f32.mrf.mxu0
      %1758 = vmatprep.mubr.f32.mxu0 0.0
      %1759 = vmatmul.mubr.f32.gmra.mxu0 %v1653
      %v1760 = vpop.f32.mrf.mxu0
      %v1761 = vadd.f32 %v1668, %v1760
      %v1762 = vpop.f32.mrf.mxu0
      %1763 = vmatprep.mubr.f32.mxu0 0.0
      %1764 = vmatmul.mubr.f32.gmra.mxu0 %v1654
      %v1765 = vpop.f32.mrf.mxu0
      %v1766 = vadd.f32 %v1668, %v1765
      %v1767 = vpop.f32.mrf.mxu0
      %1768 = vmatprep.mubr.f32.mxu0 0.0
      %1769 = vmatmul.mubr.f32.gmra.mxu0 %v1655
      %v1770 = vpop.f32.mrf.mxu0
      %v1771 = vadd.f32 %v1668, %v1770
      %v1772 = vpop.f32.mrf.mxu0
      %1773 = vmatprep.mubr.f32.mxu0 0.0
      %1774 = vmatmul.mubr.f32.gmra.mxu0 %v1656
      %v1775 = vpop.f32.mrf.mxu0
      %v1776 = vadd.f32 %v1668, %v1775
      %v1777 = vpop.f32.mrf.mxu0
      %1778 = vmatprep.mubr.f32.mxu0 0.0
      %1779 = vmatmul.mubr.f32.gmra.mxu0 %v1657
      %v1780 = vpop.f32.mrf.mxu0
      %v1781 = vadd.f32 %v1668, %v1780
      %v1782 = vpop.f32.mrf.mxu0
      %1783 = vmatprep.mubr.f32.mxu0 0.0
      %1784 = vmatmul.mubr.f32.gmra.mxu0 %v1658
      %v1785 = vpop.f32.mrf.mxu0
      %v1786 = vadd.f32 %v1668, %v1785
      %v1787 = vpop.f32.mrf.mxu0
      %1788 = vmatprep.mubr.f32.mxu0 0.0
      %1789 = vmatmul.mubr.f32.gmra.mxu0 %v1659
      %v1790 = vpop.f32.mrf.mxu0
      %v1791 = vadd.f32 %v1668, %v1790
      %v1792 = vpop.f32.mrf.mxu0
      %1793 = vmatprep.mubr.f32.mxu0 0.0
      %1794 = vmatmul.mubr.f32.gmra.mxu0 %v1660
      %v1795 = vpop.f32.mrf.mxu0
      %v1796 = vadd.f32 %v1668, %v1795
      %v1797 = vpop.f32.mrf.mxu0
      %1798 = vmatprep.mubr.f32.mxu0 0.0
      %1799 = vmatmul.mubr.f32.gmra.mxu0 %v1661
      %v1800 = vpop.f32.mrf.mxu0
      %v1801 = vadd.f32 %v1668, %v1800
      %v1802 = vpop.f32.mrf.mxu0
      %1803 = vmatprep.mubr.f32.mxu0 0.0
      %1804 = vmatmul.mubr.f32.gmra.mxu0 %v1662
      %v1805 = vpop.f32.mrf.mxu0
      %v1806 = vadd.f32 %v1668, %v1805
      %v1807 = vpop.f32.mrf.mxu0
      %1808 = vmatprep.mubr.f32.mxu0 0.0
      %1809 = vmatmul.mubr.f32.gmra.mxu0 %v1663
      %v1810 = vpop.f32.mrf.mxu0
      %v1811 = vadd.f32 %v1668, %v1810
      %v1812 = vpop.f32.mrf.mxu0
      %1813 = vdwg.mxu0
      %v1814 = vld [vmem:[%s3 + $0x1b8] sm:$0xff]
      %v1815 = vld [vmem:[%s3 + $0x1c0] sm:$0xff]
      %v1816 = vld [vmem:[%s3 + $0x1c8] sm:$0xff]
      %v1817 = vld [vmem:[%s3 + $0x1d0] sm:$0xff]
      %v1818 = vld [vmem:[%s3 + $0x1d8] sm:$0xff]
      %v1819 = vld [vmem:[%s3 + $0x1e0] sm:$0xff]
      %v1820 = vld [vmem:[%s3 + $0x1e8] sm:$0xff]
      %v1821 = vld [vmem:[%s3 + $0x1f0] sm:$0xff]
      %v1822 = vld [vmem:[%s3 + $0x1f8] sm:$0xff]
      %v1823 = vld [vmem:[%s3 + $0x200] sm:$0xff]
      %v1824 = vld [vmem:[%s3 + $0x208] sm:$0xff]
      %v1825 = vld [vmem:[%s3 + $0x210] sm:$0xff]
      %v1826 = vld [vmem:[%s3 + $0x218] sm:$0xff]
      %v1827 = vld [vmem:[%s3 + $0x220] sm:$0xff]
      %v1828 = vld [vmem:[%s3 + $0x228] sm:$0xff]
      %v1829 = vld [vmem:[%s3 + $0x230] sm:$0xff]
      %v1830 = vld [vmem:[%s3 + $0x238] sm:$0x1]
      %v1831 = vlaneseq
      %v1832 = vshrl.u32 %v1831, 7
      %v1833 = vsub.s32 0, %v1832
      %v1834 = vrot.slane %v1830, %v1833
      %1835 = vmatprep.subr.mxu0 0.0
      %1836 = vmatpush1.msra.mxu0 %v1829
      %1837 = vmatprep.subr.mxu0 0.0
      %1838 = vmatpush1.msra.mxu0 %v1828
      %1839 = vmatprep.subr.mxu0 0.0
      %1840 = vmatpush1.msra.mxu0 %v1827
      %1841 = vmatprep.subr.mxu0 0.0
      %1842 = vmatpush1.msra.mxu0 %v1826
      %1843 = vmatprep.subr.mxu0 0.0
      %1844 = vmatpush1.msra.mxu0 %v1825
      %1845 = vmatprep.subr.mxu0 0.0
      %1846 = vmatpush1.msra.mxu0 %v1824
      %1847 = vmatprep.subr.mxu0 0.0
      %1848 = vmatpush1.msra.mxu0 %v1823
      %1849 = vmatprep.subr.mxu0 0.0
      %1850 = vmatpush1.msra.mxu0 %v1822
      %1851 = vmatprep.subr.mxu0 0.0
      %1852 = vmatpush1.msra.mxu0 %v1821
      %1853 = vmatprep.subr.mxu0 0.0
      %1854 = vmatpush1.msra.mxu0 %v1820
      %1855 = vmatprep.subr.mxu0 0.0
      %1856 = vmatpush1.msra.mxu0 %v1819
      %1857 = vmatprep.subr.mxu0 0.0
      %1858 = vmatpush1.msra.mxu0 %v1818
      %1859 = vmatprep.subr.mxu0 0.0
      %1860 = vmatpush1.msra.mxu0 %v1817
      %1861 = vmatprep.subr.mxu0 0.0
      %1862 = vmatpush1.msra.mxu0 %v1816
      %1863 = vmatprep.subr.mxu0 0.0
      %1864 = vmatpush1.msra.mxu0 %v1815
      %1865 = vmatprep.subr.mxu0 0.0
      %1866 = vmatpush1.msra.mxu0 %v1814
      %1867 = vmatprep.subr.mxu0 0.0
      %1868 = vmatpush2.msra.mxu0 0.0
      %1869 = vmatprep.subr.mxu0 0.0
      %1870 = vmatpush2.msra.mxu0 0.0
      %1871 = vmatprep.subr.mxu0 0.0
      %1872 = vmatpush2.msra.mxu0 0.0
      %1873 = vmatprep.subr.mxu0 0.0
      %1874 = vmatpush2.msra.mxu0 0.0
      %1875 = vmatprep.subr.mxu0 0.0
      %1876 = vmatpush2.msra.mxu0 0.0
      %1877 = vmatprep.subr.mxu0 0.0
      %1878 = vmatpush2.msra.mxu0 0.0
      %1879 = vmatprep.subr.mxu0 0.0
      %1880 = vmatpush2.msra.mxu0 0.0
      %1881 = vmatprep.subr.mxu0 0.0
      %1882 = vmatpush2.msra.mxu0 0.0
      %1883 = vmatprep.subr.mxu0 0.0
      %1884 = vmatpush2.msra.mxu0 0.0
      %1885 = vmatprep.subr.mxu0 0.0
      %1886 = vmatpush2.msra.mxu0 0.0
      %1887 = vmatprep.subr.mxu0 0.0
      %1888 = vmatpush2.msra.mxu0 0.0
      %1889 = vmatprep.subr.mxu0 0.0
      %1890 = vmatpush2.msra.mxu0 0.0
      %1891 = vmatprep.subr.mxu0 0.0
      %1892 = vmatpush2.msra.mxu0 0.0
      %1893 = vmatprep.subr.mxu0 0.0
      %1894 = vmatpush2.msra.mxu0 0.0
      %1895 = vmatprep.subr.mxu0 0.0
      %1896 = vmatpush2.msra.mxu0 0.0
      %1897 = vmatprep.subr.mxu0 0.0
      %1898 = vmatpush2.msra.mxu0 0.0
      %1899 = vmatprep.mubr.f32.mxu0 0.0
      %1900 = vmatmul.mubr.f32.gmra.mxu0 %v1736
      %v1901 = vpop.f32.mrf.mxu0
      %v1902 = vadd.f32 %v1834, %v1901
      %v1903 = vpop.f32.mrf.mxu0
      %1904 = vmatprep.mubr.f32.mxu0 0.0
      %1905 = vmatmul.mubr.f32.gmra.mxu0 %v1741
      %v1906 = vpop.f32.mrf.mxu0
      %v1907 = vadd.f32 %v1834, %v1906
      %v1908 = vpop.f32.mrf.mxu0
      %1909 = vmatprep.mubr.f32.mxu0 0.0
      %1910 = vmatmul.mubr.f32.gmra.mxu0 %v1746
      %v1911 = vpop.f32.mrf.mxu0
      %v1912 = vadd.f32 %v1834, %v1911
      %v1913 = vpop.f32.mrf.mxu0
      %1914 = vmatprep.mubr.f32.mxu0 0.0
      %1915 = vmatmul.mubr.f32.gmra.mxu0 %v1751
      %v1916 = vpop.f32.mrf.mxu0
      %v1917 = vadd.f32 %v1834, %v1916
      %v1918 = vpop.f32.mrf.mxu0
      %1919 = vmatprep.mubr.f32.mxu0 0.0
      %1920 = vmatmul.mubr.f32.gmra.mxu0 %v1756
      %v1921 = vpop.f32.mrf.mxu0
      %v1922 = vadd.f32 %v1834, %v1921
      %v1923 = vpop.f32.mrf.mxu0
      %1924 = vmatprep.mubr.f32.mxu0 0.0
      %1925 = vmatmul.mubr.f32.gmra.mxu0 %v1761
      %v1926 = vpop.f32.mrf.mxu0
      %v1927 = vadd.f32 %v1834, %v1926
      %v1928 = vpop.f32.mrf.mxu0
      %1929 = vmatprep.mubr.f32.mxu0 0.0
      %1930 = vmatmul.mubr.f32.gmra.mxu0 %v1766
      %v1931 = vpop.f32.mrf.mxu0
      %v1932 = vadd.f32 %v1834, %v1931
      %v1933 = vpop.f32.mrf.mxu0
      %1934 = vmatprep.mubr.f32.mxu0 0.0
      %1935 = vmatmul.mubr.f32.gmra.mxu0 %v1771
      %v1936 = vpop.f32.mrf.mxu0
      %v1937 = vadd.f32 %v1834, %v1936
      %v1938 = vpop.f32.mrf.mxu0
      %1939 = vmatprep.mubr.f32.mxu0 0.0
      %1940 = vmatmul.mubr.f32.gmra.mxu0 %v1776
      %v1941 = vpop.f32.mrf.mxu0
      %v1942 = vadd.f32 %v1834, %v1941
      %v1943 = vpop.f32.mrf.mxu0
      %1944 = vmatprep.mubr.f32.mxu0 0.0
      %1945 = vmatmul.mubr.f32.gmra.mxu0 %v1781
      %v1946 = vpop.f32.mrf.mxu0
      %v1947 = vadd.f32 %v1834, %v1946
      %v1948 = vpop.f32.mrf.mxu0
      %1949 = vmatprep.mubr.f32.mxu0 0.0
      %1950 = vmatmul.mubr.f32.gmra.mxu0 %v1786
      %v1951 = vpop.f32.mrf.mxu0
      %v1952 = vadd.f32 %v1834, %v1951
      %v1953 = vpop.f32.mrf.mxu0
      %1954 = vmatprep.mubr.f32.mxu0 0.0
      %1955 = vmatmul.mubr.f32.gmra.mxu0 %v1791
      %v1956 = vpop.f32.mrf.mxu0
      %v1957 = vadd.f32 %v1834, %v1956
      %v1958 = vpop.f32.mrf.mxu0
      %1959 = vmatprep.mubr.f32.mxu0 0.0
      %1960 = vmatmul.mubr.f32.gmra.mxu0 %v1796
      %v1961 = vpop.f32.mrf.mxu0
      %v1962 = vadd.f32 %v1834, %v1961
      %v1963 = vpop.f32.mrf.mxu0
      %1964 = vmatprep.mubr.f32.mxu0 0.0
      %1965 = vmatmul.mubr.f32.gmra.mxu0 %v1801
      %v1966 = vpop.f32.mrf.mxu0
      %v1967 = vadd.f32 %v1834, %v1966
      %v1968 = vpop.f32.mrf.mxu0
      %1969 = vmatprep.mubr.f32.mxu0 0.0
      %1970 = vmatmul.mubr.f32.gmra.mxu0 %v1806
      %v1971 = vpop.f32.mrf.mxu0
      %v1972 = vadd.f32 %v1834, %v1971
      %v1973 = vpop.f32.mrf.mxu0
      %1974 = vmatprep.mubr.f32.mxu0 0.0
      %1975 = vmatmul.mubr.f32.gmra.mxu0 %v1811
      %v1976 = vpop.f32.mrf.mxu0
      %v1977 = vadd.f32 %v1834, %v1976
      %v1978 = vpop.f32.mrf.mxu0
      %1979 = vdwg.mxu0
      %v1980 = vld [vmem:[%s3 + $0x240] sm:$0xff]
      %1981 = vmatprep.subr.mxu0 0.0
      %1982 = vmatpush1.xpose.msra.mxu0 %v1977
      %1983 = vmatprep.subr.mxu0 0.0
      %1984 = vmatpush1.xpose.msra.mxu0 %v1972
      %1985 = vmatprep.subr.mxu0 0.0
      %1986 = vmatpush1.xpose.msra.mxu0 %v1967
      %1987 = vmatprep.subr.mxu0 0.0
      %1988 = vmatpush1.xpose.msra.mxu0 %v1962
      %1989 = vmatprep.subr.mxu0 0.0
      %1990 = vmatpush1.xpose.msra.mxu0 %v1957
      %1991 = vmatprep.subr.mxu0 0.0
      %1992 = vmatpush1.xpose.msra.mxu0 %v1952
      %1993 = vmatprep.subr.mxu0 0.0
      %1994 = vmatpush1.xpose.msra.mxu0 %v1947
      %1995 = vmatprep.subr.mxu0 0.0
      %1996 = vmatpush1.xpose.msra.mxu0 %v1942
      %1997 = vmatprep.subr.mxu0 0.0
      %1998 = vmatpush1.xpose.msra.mxu0 %v1937
      %1999 = vmatprep.subr.mxu0 0.0
      %2000 = vmatpush1.xpose.msra.mxu0 %v1932
      %2001 = vmatprep.subr.mxu0 0.0
      %2002 = vmatpush1.xpose.msra.mxu0 %v1927
      %2003 = vmatprep.subr.mxu0 0.0
      %2004 = vmatpush1.xpose.msra.mxu0 %v1922
      %2005 = vmatprep.subr.mxu0 0.0
      %2006 = vmatpush1.xpose.msra.mxu0 %v1917
      %2007 = vmatprep.subr.mxu0 0.0
      %2008 = vmatpush1.xpose.msra.mxu0 %v1912
      %2009 = vmatprep.subr.mxu0 0.0
      %2010 = vmatpush1.xpose.msra.mxu0 %v1907
      %2011 = vmatprep.subr.mxu0 0.0
      %2012 = vmatpush1.xpose.msra.mxu0 %v1902
      %2013 = vmatprep.subr.mxu0 0.0
      %2014 = vmatpush2.xpose.msra.mxu0 0.0
      %2015 = vmatprep.subr.mxu0 0.0
      %2016 = vmatpush2.xpose.msra.mxu0 0.0
      %2017 = vmatprep.subr.mxu0 0.0
      %2018 = vmatpush2.xpose.msra.mxu0 0.0
      %2019 = vmatprep.subr.mxu0 0.0
      %2020 = vmatpush2.xpose.msra.mxu0 0.0
      %2021 = vmatprep.subr.mxu0 0.0
      %2022 = vmatpush2.xpose.msra.mxu0 0.0
      %2023 = vmatprep.subr.mxu0 0.0
      %2024 = vmatpush2.xpose.msra.mxu0 0.0
      %2025 = vmatprep.subr.mxu0 0.0
      %2026 = vmatpush2.xpose.msra.mxu0 0.0
      %2027 = vmatprep.subr.mxu0 0.0
      %2028 = vmatpush2.xpose.msra.mxu0 0.0
      %2029 = vmatprep.subr.mxu0 0.0
      %2030 = vmatpush2.xpose.msra.mxu0 0.0
      %2031 = vmatprep.subr.mxu0 0.0
      %2032 = vmatpush2.xpose.msra.mxu0 0.0
      %2033 = vmatprep.subr.mxu0 0.0
      %2034 = vmatpush2.xpose.msra.mxu0 0.0
      %2035 = vmatprep.subr.mxu0 0.0
      %2036 = vmatpush2.xpose.msra.mxu0 0.0
      %2037 = vmatprep.subr.mxu0 0.0
      %2038 = vmatpush2.xpose.msra.mxu0 0.0
      %2039 = vmatprep.subr.mxu0 0.0
      %2040 = vmatpush2.xpose.msra.mxu0 0.0
      %2041 = vmatprep.subr.mxu0 0.0
      %2042 = vmatpush2.xpose.msra.mxu0 0.0
      %2043 = vmatprep.subr.mxu0 0.0
      %2044 = vmatpush2.xpose.msra.mxu0 0.0
      %2045 = vmatprep.mubr.f32.mxu0 0.0
      %2046 = vmatmul.mubr.f32.gmra.mxu0 %v1980
      %v2047 = vpop.f32.mrf.mxu0
      %v2048 = vadd.f32 0.0, %v2047
      %v2049 = vpop.f32.mrf.mxu0
      %2050 = vdwg.mxu0
      %v2051 = vlaneseq
      %v2052 = vshrl.u32 %v2051, 7
      %vm2053 = vcmp.lt.s32.totalorder %v2052, 4
      %v2054 = vsel %vm2053, %v2048, -1e+30
      %v2055 = vrot.slane %v2054, 4
      %v2056 = vmax.f32 %v2054, %v2055
      %v2057 = vrot.slane %v2056, 2
      %v2058 = vmax.f32 %v2056, %v2057
      %v2059 = vrot.slane %v2058, 1
      %v2060 = vmax.f32 %v2058, %v2059
      %v2061 = vsub.f32 %v2054, %v2060
      %v2062 = vmul.f32 %v2061, 1.442695
      %v2063 = vpow.pop %v2062
      %v2064 = vrot.slane %v2063, 4
      %v2065 = vadd.f32 %v2063, %v2064
      %v2066 = vrot.slane %v2065, 2
      %v2067 = vadd.f32 %v2065, %v2066
      %v2068 = vrot.slane %v2067, 1
      %v2069 = vadd.f32 %v2067, %v2068
      %v2070 = vlog2.pop %v2069
      %v2071 = vmul.f32 %v2070, 0.6931472
      %v2072 = vsub.f32 %v2061, %v2071
      %2073 = vst [vmem:[%s241] sm:$0xff] %v2072
      %p2074 = scmp.lt.s32.totalorder %s15, 7
      %s2075 = scalar_select %p2074, %s15, 7
      %s2076 = smul.addr %s2075, 8
      %s2077 = scalar_lea.vmem %s4, %s2076
      // Predicated region
      $region37: #{mining_gnn_forward.1} parent=35 // pred_check
        %p2078 = pneg %p132
      $region38: #{mining_gnn_forward.1} parent=35 // pred_check_branch
        %2080 = sbr.rel (%p2078) target = $region40
      $region39: #{mining_gnn_forward.1} parent=35 // pred_region
        _
      $region40: #{mining_gnn_forward.1} parent=35 // pred_fallthru
        _
    $region36: #{mining_gnn_forward.1} parent=5 // pred_fallthru
      _
    %p2081 = scmp.le.s32.totalorder 2, %s10
    // Predicated region
    $region41: #{mining_gnn_forward.1} parent=5 // pred_check
      %p2082 = pneg %p2081
    $region42: #{mining_gnn_forward.1} parent=5 // pred_check_branch
      %2084 = sbr.rel (%p2082) target = $region44
    $region43: #{mining_gnn_forward.1} parent=5 // pred_region
      %s2085 = ssub.s32 %s10, 2
      // Predicated region
      $region45: #{mining_gnn_forward.1} parent=43 // pred_check
        %p2086 = pneg %p138
      $region46: #{mining_gnn_forward.1} parent=43 // pred_check_branch
        %2088 = sbr.rel (%p2086) target = $region48
      $region47: #{mining_gnn_forward.1} parent=43 // pred_region
        %p2089 = scmp.lt.s32.totalorder %s16, 7
        %s2090 = scalar_select %p2089, %s16, 7
        %s2091 = smul.addr %s2090, 8
        %s2092 = scalar_lea.vmem %s4, %s2091
      $region48: #{mining_gnn_forward.1} parent=43 // pred_fallthru
        _
    $region44: #{mining_gnn_forward.1} parent=5 // pred_fallthru
      _
  $region6: #{mining_gnn_forward.1} parent=0 // loop_footer
    %s14 = sadd.s32 1, %s10
  $region7: #{mining_gnn_forward.1} parent=0 // loop_footer_branch
    %9 = sbr.rel target = $region3
  $region8: #{mining_gnn_forward.1} parent=0 // loop_exit
    _

</llo_original>
